<compile_context>
chip_gen: v7x
topology: tpu7x:2x2x1
jax: 0.10.0
libtpu: 0.0.40
codegen_flags: <defaults>
</compile_context>

<pallas_src>
import functools

import jax
import jax.numpy as jnp
from jax.experimental import pallas as pl
from jax.experimental.pallas import tpu as pltpu


def edge_mlp_kernel(x_ref, w1_ref, b1_ref, w2_ref, b2_ref, g_ref, beta_ref,
                    o_ref, *, eps: float, compute_dtype):
    """Fused MLP + LayerNorm on a (TM, n_in) tile of edges.

    x_ref:  (TM, n_in)      edge features tile (original dtype, cast in-kernel)
    w1_ref: (n_in, latent)  first linear weight (bf16, resident)
    b1_ref: (1, latent)     first linear bias (f32)
    w2_ref: (latent, n_out) second linear weight (bf16, resident)
    b2_ref: (1, n_out)      second linear bias (f32)
    g_ref / beta_ref: (1, n_out) LayerNorm gamma / beta (f32)
    o_ref:  (TM, n_out)     output tile (caller dtype)
    """
    # Cast to the MXU compute dtype here (cheap VPU work hidden under the
    # matmul / DMA) instead of a separate XLA pass over edge_attr in HBM.
    x = x_ref[...].astype(compute_dtype)

    # Linear 1 + ReLU: bf16 x bf16 -> f32 accumulate on the MXU.
    h = jnp.dot(x, w1_ref[...], preferred_element_type=jnp.float32)
    h = jnp.maximum(h + b1_ref[...], 0.0)

    # Linear 2 + ReLU (activate_final=True).  Cast the activation back to the
    # compute dtype so the MXU runs a single bf16 pass instead of multi-pass f32.
    y = jnp.dot(h.astype(compute_dtype), w2_ref[...],
                preferred_element_type=jnp.float32)
    y = jnp.maximum(y + b2_ref[...], 0.0)

    # LayerNorm over the feature axis (two-pass / centered moments, all f32,
    # matching the PyTorch formulation).
    inv_n = 1.0 / y.shape[-1]
    mean = jnp.sum(y, axis=-1, keepdims=True) * inv_n
    centered = y - mean
    var = jnp.sum(centered * centered, axis=-1, keepdims=True) * inv_n
    y_norm = centered * jax.lax.rsqrt(var + eps)
    o_ref[...] = (y_norm * g_ref[...] + beta_ref[...]).astype(o_ref.dtype)


def _round_up(x, m):
    return ((x + m - 1) // m) * m


def independent_edge_mode(edge_attr, w1, b1, w2, b2, gamma, beta, *,
                          tile_edges=4096, eps=1e-5,
                          compute_dtype=jnp.bfloat16, out_dtype=None):
    """edge_attr [E, n_in] -> [E, n_out]  (Linear->ReLU->Linear->ReLU->LayerNorm)."""
    E, n_in = edge_attr.shape
    latent = w1.shape[1]
    n_out = w2.shape[1]
    if out_dtype is None:
        out_dtype = edge_attr.dtype

    # Tile choice: as large as practical to amortize the ~0.35us/step grid
    # overhead (sweep 2048-8192 per generation), sublane-aligned (x8), clamped
    # for small E.  Keep grid >= 2 whenever possible so v7x's two TensorCores
    # both get work on the "parallel" edge axis.
    tile = min(tile_edges, _round_up(E, 8))
    if E > 8 and pl.cdiv(E, tile) < 2:
        tile = max(8, _round_up(pl.cdiv(E, 2), 8))
    assert tile % 8 == 0
    grid_e = pl.cdiv(E, tile)  # partial last block handled by Pallas masking

    # bf16 weights for the MXU; bias / LayerNorm params stay f32.
    w1c = w1.astype(compute_dtype)
    w2c = w2.astype(compute_dtype)
    b1r = b1.reshape(1, latent).astype(jnp.float32)
    b2r = b2.reshape(1, n_out).astype(jnp.float32)
    g = gamma.reshape(1, n_out).astype(jnp.float32)
    bt = beta.reshape(1, n_out).astype(jnp.float32)

    kernel = functools.partial(edge_mlp_kernel, eps=eps,
                               compute_dtype=compute_dtype)

    w_itemsize = jnp.dtype(compute_dtype).itemsize
    in_itemsize = jnp.dtype(edge_attr.dtype).itemsize
    out_itemsize = jnp.dtype(out_dtype).itemsize
    cost = pl.CostEstimate(
        flops=2 * E * (n_in * latent + latent * n_out),
        transcendentals=E,  # one rsqrt per edge row
        bytes_accessed=(E * n_in * in_itemsize
                        + E * n_out * out_itemsize
                        + (n_in * latent + latent * n_out) * w_itemsize
                        + (latent + 3 * n_out) * 4),
    )

    return pl.pallas_call(
        kernel,
        out_shape=jax.ShapeDtypeStruct((E, n_out), out_dtype),
        grid_spec=pltpu.PrefetchScalarGridSpec(
            num_scalar_prefetch=0,
            grid=(grid_e,),
            in_specs=[
                pl.BlockSpec((tile, n_in), lambda i: (i, 0)),       # x tile
                pl.BlockSpec((n_in, latent), lambda i: (0, 0)),     # W1 (resident)
                pl.BlockSpec((1, latent), lambda i: (0, 0)),        # b1
                pl.BlockSpec((latent, n_out), lambda i: (0, 0)),    # W2 (resident)
                pl.BlockSpec((1, n_out), lambda i: (0, 0)),         # b2
                pl.BlockSpec((1, n_out), lambda i: (0, 0)),         # gamma
                pl.BlockSpec((1, n_out), lambda i: (0, 0)),         # beta
            ],
            out_specs=pl.BlockSpec((tile, n_out), lambda i: (i, 0)),
        ),
        compiler_params=pltpu.CompilerParams(
            dimension_semantics=("parallel",),   # megacore-shard the edge axis
            vmem_limit_bytes=32 * 1024 * 1024),  # safe on v5e/v6e/v7x
        cost_estimate=cost,
    )(edge_attr, w1c, b1r, w2c, b2r, g, bt)


def reference(edge_attr, w1, b1, w2, b2, gamma, beta, eps=1e-5,
              compute_dtype=jnp.float32):
    """Pure-JAX reference; compute_dtype mirrors the kernel's matmul dtype."""
    x = edge_attr.astype(compute_dtype)
    h = jnp.dot(x, w1.astype(compute_dtype), preferred_element_type=jnp.float32)
    h = jnp.maximum(h + b1, 0.0)
    y = jnp.dot(h.astype(compute_dtype), w2.astype(compute_dtype),
                preferred_element_type=jnp.float32)
    y = jnp.maximum(y + b2, 0.0)
    mean = jnp.mean(y, axis=-1, keepdims=True)
    var = jnp.mean(jnp.square(y - mean), axis=-1, keepdims=True)
    return (y - mean) * jax.lax.rsqrt(var + eps) * gamma + beta


if __name__ == "__main__":
    # IndependentEdgeMode(n_edge_feats_in=32, n_edge_feats_out=64, latent_size=128,
    #                     activate_final=True, normalize=True)
    # TODO(synk): the torch_geometric `data` container mutation is host-side
    # plumbing; only the edge_attr transform is a kernel.
    n_edge_feats_in = 32
    n_edge_feats_out = 64
    latent_size = 128
    num_edges = 1000  # deliberately NOT a multiple of the tile size (exercises boundary masking)

    key = jax.random.PRNGKey(0)
    k_x, k_w1, k_b1, k_w2, k_b2 = jax.random.split(key, 5)

    edge_attr = jax.random.normal(k_x, (num_edges, n_edge_feats_in), jnp.float32)

    # Deterministic synthetic params (mimic default torch init scale).
    w1 = jax.random.normal(k_w1, (n_edge_feats_in, latent_size), jnp.float32) * 0.1
    b1 = jax.random.normal(k_b1, (latent_size,), jnp.float32) * 0.01
    w2 = jax.random.normal(k_w2, (latent_size, n_edge_feats_out), jnp.float32) * 0.1
    b2 = jax.random.normal(k_b2, (n_edge_feats_out,), jnp.float32) * 0.01
    gamma = jnp.ones((n_edge_feats_out,), jnp.float32)   # LayerNorm weight
    beta = jnp.zeros((n_edge_feats_out,), jnp.float32)   # LayerNorm bias

    out = independent_edge_mode(edge_attr, w1, b1, w2, b2, gamma, beta)
    out = jax.block_until_ready(out)
    assert out.shape == (num_edges, n_edge_feats_out)
    assert out.dtype == edge_attr.dtype

    # Tight check vs a precision-matched (bf16 matmul operand) reference.
    ref_bf16 = reference(edge_attr, w1, b1, w2, b2, gamma, beta,
                         compute_dtype=jnp.bfloat16)
    assert jnp.allclose(out, ref_bf16, atol=2e-3, rtol=2e-3), \
        "mismatch vs precision-matched reference"

    # Loose sanity check vs the full-f32 PyTorch-equivalent reference
    # (bf16 matmul operands => ~1e-2 level differences expected).
    ref_f32 = reference(edge_attr, w1, b1, w2, b2, gamma, beta,
                        compute_dtype=jnp.float32)
    assert jnp.allclose(out, ref_f32, atol=1e-1, rtol=1e-1), \
        "mismatch vs f32 reference"

    # Optional bf16-output path (halves the dominant HBM write); callers opt in.
    out_bf16 = independent_edge_mode(edge_attr, w1, b1, w2, b2, gamma, beta,
                                     out_dtype=jnp.bfloat16)
    out_bf16 = jax.block_until_ready(out_bf16)
    assert out_bf16.dtype == jnp.bfloat16
    assert jnp.allclose(out_bf16.astype(jnp.float32), ref_bf16,
                        atol=2e-2, rtol=2e-2), \
        "mismatch vs precision-matched reference (bf16 output)"

    print("KERNEL_OK")
</pallas_src>

<mosaic_0001>
module attributes {stable_mosaic.version = 11 : i64} {
  func.func @edge_mlp_kernel(%arg0: i32, %arg1: memref<504x32xf32, #tpu.memory_space<vmem>>, %arg2: memref<32x128xbf16, #tpu.memory_space<vmem>>, %arg3: memref<1x128xf32, #tpu.memory_space<vmem>>, %arg4: memref<128x64xbf16, #tpu.memory_space<vmem>>, %arg5: memref<1x64xf32, #tpu.memory_space<vmem>>, %arg6: memref<1x64xf32, #tpu.memory_space<vmem>>, %arg7: memref<1x64xf32, #tpu.memory_space<vmem>>, %arg8: memref<504x64xf32, #tpu.memory_space<vmem>>) attributes {dimension_semantics = [#tpu.dimension_semantics<parallel>], iteration_bounds = array<i64: 2>, scalar_prefetch = 0 : i64, scratch_operands = 0 : i64, tpu.core_type = #tpu.core_type<tc>, window_params = [{transform_indices = @transform_0, window_bounds = array<i64: 504, 32>}, {pipeline_mode = #tpu.pipeline_mode<synchronous>, transform_indices = @transform_1, window_bounds = array<i64: 32, 128>}, {pipeline_mode = #tpu.pipeline_mode<synchronous>, transform_indices = @transform_2, window_bounds = array<i64: 1, 128>}, {pipeline_mode = #tpu.pipeline_mode<synchronous>, transform_indices = @transform_3, window_bounds = array<i64: 128, 64>}, {pipeline_mode = #tpu.pipeline_mode<synchronous>, transform_indices = @transform_4, window_bounds = array<i64: 1, 64>}, {pipeline_mode = #tpu.pipeline_mode<synchronous>, transform_indices = @transform_5, window_bounds = array<i64: 1, 64>}, {pipeline_mode = #tpu.pipeline_mode<synchronous>, transform_indices = @transform_6, window_bounds = array<i64: 1, 64>}, {transform_indices = @transform_7, window_bounds = array<i64: 504, 64>}]} {
    %c0 = arith.constant 0 : index
    %c0_0 = arith.constant 0 : index
    %0 = vector.load %arg1[%c0, %c0_0] : memref<504x32xf32, #tpu.memory_space<vmem>>, vector<504x32xf32>
    %1 = arith.truncf %0 : vector<504x32xf32> to vector<504x32xbf16>
    %c0_1 = arith.constant 0 : index
    %c0_2 = arith.constant 0 : index
    %2 = vector.load %arg2[%c0_1, %c0_2] : memref<32x128xbf16, #tpu.memory_space<vmem>>, vector<32x128xbf16>
    %cst = arith.constant dense<0.000000e+00> : vector<504x128xf32>
    %3 = tpu.matmul %1, %2, %cst {dimension_numbers = #tpu.dot_dimension_numbers<[1], [0], [0], [1], [0, 0, 1, 1], [], []>} : vector<504x32xbf16>, vector<32x128xbf16>, vector<504x128xf32> -> vector<504x128xf32>
    %c0_3 = arith.constant 0 : index
    %c0_4 = arith.constant 0 : index
    %4 = vector.load %arg3[%c0_3, %c0_4] : memref<1x128xf32, #tpu.memory_space<vmem>>, vector<1x128xf32>
    %5 = vector.broadcast %4 : vector<1x128xf32> to vector<504x128xf32>
    %6 = arith.addf %3, %5 : vector<504x128xf32>
    %cst_5 = arith.constant 0.000000e+00 : f32
    %7 = vector.broadcast %cst_5 : f32 to vector<504x128xf32>
    %8 = arith.maximumf %6, %7 : vector<504x128xf32>
    %9 = arith.truncf %8 : vector<504x128xf32> to vector<504x128xbf16>
    %c0_6 = arith.constant 0 : index
    %c0_7 = arith.constant 0 : index
    %10 = vector.load %arg4[%c0_6, %c0_7] : memref<128x64xbf16, #tpu.memory_space<vmem>>, vector<128x64xbf16>
    %cst_8 = arith.constant dense<0.000000e+00> : vector<504x64xf32>
    %11 = tpu.matmul %9, %10, %cst_8 {dimension_numbers = #tpu.dot_dimension_numbers<[1], [0], [0], [1], [0, 0, 1, 1], [], []>} : vector<504x128xbf16>, vector<128x64xbf16>, vector<504x64xf32> -> vector<504x64xf32>
    %c0_9 = arith.constant 0 : index
    %c0_10 = arith.constant 0 : index
    %12 = vector.load %arg5[%c0_9, %c0_10] : memref<1x64xf32, #tpu.memory_space<vmem>>, vector<1x64xf32>
    %13 = vector.broadcast %12 : vector<1x64xf32> to vector<504x64xf32>
    %14 = arith.addf %11, %13 : vector<504x64xf32>
    %cst_11 = arith.constant 0.000000e+00 : f32
    %15 = vector.broadcast %cst_11 : f32 to vector<504x64xf32>
    %16 = arith.maximumf %14, %15 : vector<504x64xf32>
    %cst_12 = arith.constant dense<0.000000e+00> : vector<504xf32>
    %17 = vector.multi_reduction <add>, %16, %cst_12 [1] : vector<504x64xf32> to vector<504xf32>
    %18 = vector.shape_cast %17 : vector<504xf32> to vector<504x1xf32>
    %cst_13 = arith.constant 1.562500e-02 : f32
    %19 = vector.broadcast %cst_13 : f32 to vector<504x1xf32>
    %20 = arith.mulf %18, %19 : vector<504x1xf32>
    %21 = vector.broadcast %20 : vector<504x1xf32> to vector<504x64xf32>
    %22 = arith.subf %16, %21 : vector<504x64xf32>
    %23 = arith.mulf %22, %22 : vector<504x64xf32>
    %cst_14 = arith.constant dense<0.000000e+00> : vector<504xf32>
    %24 = vector.multi_reduction <add>, %23, %cst_14 [1] : vector<504x64xf32> to vector<504xf32>
    %25 = vector.shape_cast %24 : vector<504xf32> to vector<504x1xf32>
    %cst_15 = arith.constant 1.562500e-02 : f32
    %26 = vector.broadcast %cst_15 : f32 to vector<504x1xf32>
    %27 = arith.mulf %25, %26 : vector<504x1xf32>
    %cst_16 = arith.constant 9.99999974E-6 : f32
    %28 = vector.broadcast %cst_16 : f32 to vector<504x1xf32>
    %29 = arith.addf %27, %28 : vector<504x1xf32>
    %30 = math.rsqrt %29 : vector<504x1xf32>
    %31 = vector.broadcast %30 : vector<504x1xf32> to vector<504x64xf32>
    %32 = arith.mulf %22, %31 : vector<504x64xf32>
    %c0_17 = arith.constant 0 : index
    %c0_18 = arith.constant 0 : index
    %33 = vector.load %arg6[%c0_17, %c0_18] : memref<1x64xf32, #tpu.memory_space<vmem>>, vector<1x64xf32>
    %34 = vector.broadcast %33 : vector<1x64xf32> to vector<504x64xf32>
    %35 = arith.mulf %32, %34 : vector<504x64xf32>
    %c0_19 = arith.constant 0 : index
    %c0_20 = arith.constant 0 : index
    %36 = vector.load %arg7[%c0_19, %c0_20] : memref<1x64xf32, #tpu.memory_space<vmem>>, vector<1x64xf32>
    %37 = vector.broadcast %36 : vector<1x64xf32> to vector<504x64xf32>
    %38 = arith.addf %35, %37 : vector<504x64xf32>
    %c0_21 = arith.constant 0 : index
    %c0_22 = arith.constant 0 : index
    %39 = vector.load %arg8[%c0_21, %c0_22] : memref<504x64xf32, #tpu.memory_space<vmem>>, vector<504x64xf32>
    tpu.vector_store %arg8[%c0_21, %c0_22], %38 {strides = array<i32>} : memref<504x64xf32, #tpu.memory_space<vmem>>, vector<504x64xf32>,
    return
  }
  func.func @transform_0(%arg0: i32) -> (i32, i32) {
    %c0_i32 = arith.constant 0 : i32
    %c0_i32_0 = arith.constant 0 : i32
    return %arg0, %c0_i32 : i32, i32
  }
  func.func @transform_1(%arg0: i32) -> (i32, i32) {
    %c0_i32 = arith.constant 0 : i32
    %c0_i32_0 = arith.constant 0 : i32
    %c0_i32_1 = arith.constant 0 : i32
    return %c0_i32, %c0_i32_0 : i32, i32
  }
  func.func @transform_2(%arg0: i32) -> (i32, i32) {
    %c0_i32 = arith.constant 0 : i32
    %c0_i32_0 = arith.constant 0 : i32
    %c0_i32_1 = arith.constant 0 : i32
    return %c0_i32, %c0_i32_0 : i32, i32
  }
  func.func @transform_3(%arg0: i32) -> (i32, i32) {
    %c0_i32 = arith.constant 0 : i32
    %c0_i32_0 = arith.constant 0 : i32
    %c0_i32_1 = arith.constant 0 : i32
    return %c0_i32, %c0_i32_0 : i32, i32
  }
  func.func @transform_4(%arg0: i32) -> (i32, i32) {
    %c0_i32 = arith.constant 0 : i32
    %c0_i32_0 = arith.constant 0 : i32
    %c0_i32_1 = arith.constant 0 : i32
    return %c0_i32, %c0_i32_0 : i32, i32
  }
  func.func @transform_5(%arg0: i32) -> (i32, i32) {
    %c0_i32 = arith.constant 0 : i32
    %c0_i32_0 = arith.constant 0 : i32
    %c0_i32_1 = arith.constant 0 : i32
    return %c0_i32, %c0_i32_0 : i32, i32
  }
  func.func @transform_6(%arg0: i32) -> (i32, i32) {
    %c0_i32 = arith.constant 0 : i32
    %c0_i32_0 = arith.constant 0 : i32
    %c0_i32_1 = arith.constant 0 : i32
    return %c0_i32, %c0_i32_0 : i32, i32
  }
  func.func @transform_7(%arg0: i32) -> (i32, i32) {
    %c0_i32 = arith.constant 0 : i32
    %c0_i32_0 = arith.constant 0 : i32
    return %arg0, %c0_i32 : i32, i32
  }
}

</mosaic_0001>

<llo_original>
// kernel: tpu_custom_call.1
$region0: #{tpu_custom_call.1}
  #allocation0 [shape = 'u32[]', space=smem, size = 0x4, offset = 0x4, fixed_abs, tag = 'smem constant byte address 0x4 - core index']
  #allocation1 [shape = 'u32[144,128]{1,0:T(1,128)}', space=vmem, size = 0x12000, scoped, tag = 'internal scratch']
  %s0 = inlined_call_operand.vmem [shape: f32[1000,32], index: 0, kind: input, shape index: {}]
  %s1 = inlined_call_operand.vmem [shape: bf16[32,128], index: 1, kind: input, shape index: {}]
  %s2 = inlined_call_operand.vmem [shape: f32[1,128], index: 2, kind: input, shape index: {}]
  %s3 = inlined_call_operand.vmem [shape: bf16[128,64], index: 3, kind: input, shape index: {}]
  %s4 = inlined_call_operand.vmem [shape: f32[1,64], index: 4, kind: input, shape index: {}]
  %s5 = inlined_call_operand.vmem [shape: f32[1,64], index: 5, kind: input, shape index: {}]
  %s6 = inlined_call_operand.vmem [shape: f32[1,64], index: 6, kind: input, shape index: {}]
  %s7 = inlined_call_operand.vmem [shape: f32[1000,64], index: 7, kind: output, shape index: {}]
  %s8 = sld [smem:[#allocation0]]
  $region109: #{tpu_custom_call.1} parent=0
    _
  %s10 = ssub.s32 1, %s8
  %s11 = scalar_select 0, %s10, %s8
  $region1: #{tpu_custom_call.1} parent=0
    #allocation2 [shape = 'u8[516096]{0}', space=vmem, size = 0x7e000, scoped, tag = 'output window, operand 0']
    loop: start=0, step=1, limit=4
    $region2: #{tpu_custom_call.1} parent=1 // loop_pre_header
      _
    $region3: #{tpu_custom_call.1} parent=1 // loop_header
      %s13 = sphi 0, %s17
      %p14 = scmp.ge.s32.totalorder %s13, 4
      %s23 = sphi 0, %s25
      %s26 = sphi 0, %s23
      %s27 = sphi 0, %s26
      %s43 = sphi 0, %s27
      %s47 = sphi 0, %s47
      %s49 = sphi 0, %s47
      %s50 = sphi 0, %s49
      %s64 = sphi 0, %s50
      %s68 = sphi 0, %s68
      %s70 = sphi 0, %s68
      %s71 = sphi 0, %s70
      %s85 = sphi 0, %s71
      %s89 = sphi 0, %s89
      %s91 = sphi 0, %s89
      %s92 = sphi 0, %s91
      %s106 = sphi 0, %s92
      %s110 = sphi 0, %s110
      %s112 = sphi 0, %s110
      %s113 = sphi 0, %s112
      %s127 = sphi 0, %s113
      %s131 = sphi 0, %s131
      %s133 = sphi 0, %s131
      %s134 = sphi 0, %s133
      %s148 = sphi 0, %s134
      %s152 = sphi 0, %s152
      %s154 = sphi 0, %s152
      %s155 = sphi 0, %s154
      %s169 = sphi 0, %s155
      %s175 = sphi 0, %s177
      %s178 = sphi 0, %s175
      %s179 = sphi 0, %s178
      %s195 = sphi 0, %s179
    $region4: #{tpu_custom_call.1} parent=1 // loop_header_branch
      %16 = sbr.rel (%p14) target = $region8
    $region5: #{tpu_custom_call.1} parent=1 // loop_body
      %s18 = ssub.s32 %s13, 1
      %s19 = ssub.s32 %s13, 2
      %s20 = sadd.s32 %s13, 1
      %s21 = ssub.s32 %s13, %s20
      %p22 = scmp.eq.s32.totalorder %s21, 0
      %s24 = sadd.s32 %s23, 1
      %s25 = scalar_select %p22, %s23, %s24
      %p28 = pneg %p22
      %p29 = scmp.eq.s32.totalorder %s13, 1
      %p30 = por %p28, %p29
      %p31 = scmp.ne.s32.totalorder %s23, %s26
      %p32 = scmp.eq.s32.totalorder %s13, 0
      %p33 = por %p31, %p32
      %p34 = scmp.ne.s32.totalorder %s23, %s26
      %p35 = scmp.eq.s32.totalorder %s18, 1
      %p36 = por %p34, %p35
      %p37 = scmp.ne.s32.totalorder %s26, %s27
      %p38 = scmp.eq.s32.totalorder %s18, 0
      %p39 = por %p37, %p38
      %p40 = scmp.ne.s32.totalorder %s26, %s27
      %p41 = scmp.eq.s32.totalorder %s19, 1
      %p42 = por %p40, %p41
      %p44 = scmp.ne.s32.totalorder %s27, %s43
      %p45 = scmp.eq.s32.totalorder %s19, 0
      %p46 = por %p44, %p45
      %s48 = sadd.s32 %s47, 1
      %p51 = scmp.eq.s32.totalorder %s13, 1
      %p52 = scmp.ne.s32.totalorder %s47, %s49
      %p53 = scmp.eq.s32.totalorder %s13, 0
      %p54 = por %p52, %p53
      %p55 = scmp.ne.s32.totalorder %s47, %s49
      %p56 = scmp.eq.s32.totalorder %s18, 1
      %p57 = por %p55, %p56
      %p58 = scmp.ne.s32.totalorder %s49, %s50
      %p59 = scmp.eq.s32.totalorder %s18, 0
      %p60 = por %p58, %p59
      %p61 = scmp.ne.s32.totalorder %s49, %s50
      %p62 = scmp.eq.s32.totalorder %s19, 1
      %p63 = por %p61, %p62
      %p65 = scmp.ne.s32.totalorder %s50, %s64
      %p66 = scmp.eq.s32.totalorder %s19, 0
      %p67 = por %p65, %p66
      %s69 = sadd.s32 %s68, 1
      %p72 = scmp.eq.s32.totalorder %s13, 1
      %p73 = scmp.ne.s32.totalorder %s68, %s70
      %p74 = scmp.eq.s32.totalorder %s13, 0
      %p75 = por %p73, %p74
      %p76 = scmp.ne.s32.totalorder %s68, %s70
      %p77 = scmp.eq.s32.totalorder %s18, 1
      %p78 = por %p76, %p77
      %p79 = scmp.ne.s32.totalorder %s70, %s71
      %p80 = scmp.eq.s32.totalorder %s18, 0
      %p81 = por %p79, %p80
      %p82 = scmp.ne.s32.totalorder %s70, %s71
      %p83 = scmp.eq.s32.totalorder %s19, 1
      %p84 = por %p82, %p83
      %p86 = scmp.ne.s32.totalorder %s71, %s85
      %p87 = scmp.eq.s32.totalorder %s19, 0
      %p88 = por %p86, %p87
      %s90 = sadd.s32 %s89, 1
      %p93 = scmp.eq.s32.totalorder %s13, 1
      %p94 = scmp.ne.s32.totalorder %s89, %s91
      %p95 = scmp.eq.s32.totalorder %s13, 0
      %p96 = por %p94, %p95
      %p97 = scmp.ne.s32.totalorder %s89, %s91
      %p98 = scmp.eq.s32.totalorder %s18, 1
      %p99 = por %p97, %p98
      %p100 = scmp.ne.s32.totalorder %s91, %s92
      %p101 = scmp.eq.s32.totalorder %s18, 0
      %p102 = por %p100, %p101
      %p103 = scmp.ne.s32.totalorder %s91, %s92
      %p104 = scmp.eq.s32.totalorder %s19, 1
      %p105 = por %p103, %p104
      %p107 = scmp.ne.s32.totalorder %s92, %s106
      %p108 = scmp.eq.s32.totalorder %s19, 0
      %p109 = por %p107, %p108
      %s111 = sadd.s32 %s110, 1
      %p114 = scmp.eq.s32.totalorder %s13, 1
      %p115 = scmp.ne.s32.totalorder %s110, %s112
      %p116 = scmp.eq.s32.totalorder %s13, 0
      %p117 = por %p115, %p116
      %p118 = scmp.ne.s32.totalorder %s110, %s112
      %p119 = scmp.eq.s32.totalorder %s18, 1
      %p120 = por %p118, %p119
      %p121 = scmp.ne.s32.totalorder %s112, %s113
      %p122 = scmp.eq.s32.totalorder %s18, 0
      %p123 = por %p121, %p122
      %p124 = scmp.ne.s32.totalorder %s112, %s113
      %p125 = scmp.eq.s32.totalorder %s19, 1
      %p126 = por %p124, %p125
      %p128 = scmp.ne.s32.totalorder %s113, %s127
      %p129 = scmp.eq.s32.totalorder %s19, 0
      %p130 = por %p128, %p129
      %s132 = sadd.s32 %s131, 1
      %p135 = scmp.eq.s32.totalorder %s13, 1
      %p136 = scmp.ne.s32.totalorder %s131, %s133
      %p137 = scmp.eq.s32.totalorder %s13, 0
      %p138 = por %p136, %p137
      %p139 = scmp.ne.s32.totalorder %s131, %s133
      %p140 = scmp.eq.s32.totalorder %s18, 1
      %p141 = por %p139, %p140
      %p142 = scmp.ne.s32.totalorder %s133, %s134
      %p143 = scmp.eq.s32.totalorder %s18, 0
      %p144 = por %p142, %p143
      %p145 = scmp.ne.s32.totalorder %s133, %s134
      %p146 = scmp.eq.s32.totalorder %s19, 1
      %p147 = por %p145, %p146
      %p149 = scmp.ne.s32.totalorder %s134, %s148
      %p150 = scmp.eq.s32.totalorder %s19, 0
      %p151 = por %p149, %p150
      %s153 = sadd.s32 %s152, 1
      %p156 = scmp.eq.s32.totalorder %s13, 1
      %p157 = scmp.ne.s32.totalorder %s152, %s154
      %p158 = scmp.eq.s32.totalorder %s13, 0
      %p159 = por %p157, %p158
      %p160 = scmp.ne.s32.totalorder %s152, %s154
      %p161 = scmp.eq.s32.totalorder %s18, 1
      %p162 = por %p160, %p161
      %p163 = scmp.ne.s32.totalorder %s154, %s155
      %p164 = scmp.eq.s32.totalorder %s18, 0
      %p165 = por %p163, %p164
      %p166 = scmp.ne.s32.totalorder %s154, %s155
      %p167 = scmp.eq.s32.totalorder %s19, 1
      %p168 = por %p166, %p167
      %p170 = scmp.ne.s32.totalorder %s155, %s169
      %p171 = scmp.eq.s32.totalorder %s19, 0
      %p172 = por %p170, %p171
      %s173 = ssub.s32 %s13, %s20
      %p174 = scmp.eq.s32.totalorder %s173, 0
      %s176 = sadd.s32 %s175, 1
      %s177 = scalar_select %p174, %s175, %s176
      %p180 = pneg %p174
      %p181 = scmp.eq.s32.totalorder %s13, 1
      %p182 = por %p180, %p181
      %p183 = scmp.ne.s32.totalorder %s175, %s178
      %p184 = scmp.eq.s32.totalorder %s13, 0
      %p185 = por %p183, %p184
      %p186 = scmp.ne.s32.totalorder %s175, %s178
      %p187 = scmp.eq.s32.totalorder %s18, 1
      %p188 = por %p186, %p187
      %p189 = scmp.ne.s32.totalorder %s178, %s179
      %p190 = scmp.eq.s32.totalorder %s18, 0
      %p191 = por %p189, %p190
      %p192 = scmp.ne.s32.totalorder %s178, %s179
      %p193 = scmp.eq.s32.totalorder %s19, 1
      %p194 = por %p192, %p193
      %p196 = scmp.ne.s32.totalorder %s179, %s195
      %p197 = scmp.eq.s32.totalorder %s19, 0
      %p198 = por %p196, %p197
      %p199 = scmp.le.s32.totalorder 1, %s13
      %p200 = scmp.lt.s32.totalorder %s13, 3
      %p201 = pnand %p199, %p200
      %p202 = pneg %p201
      // Predicated region
      $region9: #{tpu_custom_call.1} parent=5 // pred_check
        _
      $region10: #{tpu_custom_call.1} parent=5 // pred_check_branch
        %204 = sbr.rel (%p201) target = $region12
      $region11: #{tpu_custom_call.1} parent=5 // pred_region
        %s205 = ssub.s32 %s13, 1
        // Predicated region
        $region13: #{tpu_custom_call.1} parent=11 // pred_check
          %p206 = pneg %p60
        $region14: #{tpu_custom_call.1} parent=11 // pred_check_branch
          %208 = sbr.rel (%p206) target = $region16
        $region15: #{tpu_custom_call.1} parent=11 // pred_region
          _
        $region16: #{tpu_custom_call.1} parent=11 // pred_fallthru
          _
        // Predicated region
        $region17: #{tpu_custom_call.1} parent=11 // pred_check
          %p209 = pneg %p81
        $region18: #{tpu_custom_call.1} parent=11 // pred_check_branch
          %211 = sbr.rel (%p209) target = $region20
        $region19: #{tpu_custom_call.1} parent=11 // pred_region
          _
        $region20: #{tpu_custom_call.1} parent=11 // pred_fallthru
          _
        // Predicated region
        $region21: #{tpu_custom_call.1} parent=11 // pred_check
          %p212 = pneg %p102
        $region22: #{tpu_custom_call.1} parent=11 // pred_check_branch
          %214 = sbr.rel (%p212) target = $region24
        $region23: #{tpu_custom_call.1} parent=11 // pred_region
          _
        $region24: #{tpu_custom_call.1} parent=11 // pred_fallthru
          _
        // Predicated region
        $region25: #{tpu_custom_call.1} parent=11 // pred_check
          %p215 = pneg %p123
        $region26: #{tpu_custom_call.1} parent=11 // pred_check_branch
          %217 = sbr.rel (%p215) target = $region28
        $region27: #{tpu_custom_call.1} parent=11 // pred_region
          _
        $region28: #{tpu_custom_call.1} parent=11 // pred_fallthru
          _
        // Predicated region
        $region29: #{tpu_custom_call.1} parent=11 // pred_check
          %p218 = pneg %p144
        $region30: #{tpu_custom_call.1} parent=11 // pred_check_branch
          %220 = sbr.rel (%p218) target = $region32
        $region31: #{tpu_custom_call.1} parent=11 // pred_region
          _
        $region32: #{tpu_custom_call.1} parent=11 // pred_fallthru
          _
        // Predicated region
        $region33: #{tpu_custom_call.1} parent=11 // pred_check
          %p221 = pneg %p165
        $region34: #{tpu_custom_call.1} parent=11 // pred_check_branch
          %223 = sbr.rel (%p221) target = $region36
        $region35: #{tpu_custom_call.1} parent=11 // pred_region
          _
        $region36: #{tpu_custom_call.1} parent=11 // pred_fallthru
          _
      $region12: #{tpu_custom_call.1} parent=5 // pred_fallthru
        _
      %p224 = scmp.lt.s32.totalorder %s13, 2
      // Predicated region
      $region37: #{tpu_custom_call.1} parent=5 // pred_check
        %p225 = pneg %p224
      $region38: #{tpu_custom_call.1} parent=5 // pred_check_branch
        %227 = sbr.rel (%p225) target = $region40
      $region39: #{tpu_custom_call.1} parent=5 // pred_region
        // Predicated region
        $region41: #{tpu_custom_call.1} parent=39 // pred_check
          %p228 = pneg %p33
        $region42: #{tpu_custom_call.1} parent=39 // pred_check_branch
          %230 = sbr.rel (%p228) target = $region44
        $region43: #{tpu_custom_call.1} parent=39 // pred_region
          %s231 = smul.u32 63, %s13
          %s232 = ssub.s32 125, %s231
          %p233 = scmp.lt.s32.totalorder %s232, 63
          %s234 = scalar_select %p233, %s232, 63
          %s235 = smul.u32 128, %s234
          %p236 = scmp.lt.s32.totalorder %s231, 124
          %s237 = scalar_select %p236, %s231, 124
          %s238 = smul.addr %s237, 8
          %s239 = scalar_lea.vmem %s0, %s238
          %s240 = smul.u32 63, %s13
          %s241 = ssub.s32 125, %s240
          %p242 = scmp.lt.s32.totalorder %s241, 63
          %s243 = scalar_select %p242, %s241, 63
          %s244 = smul.u32 128, %s243
        $region44: #{tpu_custom_call.1} parent=39 // pred_fallthru
          _
      $region40: #{tpu_custom_call.1} parent=5 // pred_fallthru
        _
      %p245 = scmp.le.s32.totalorder 1, %s13
      %p246 = scmp.lt.s32.totalorder %s13, 3
      %p247 = pnand %p245, %p246
      %p248 = pneg %p247
      // Predicated region
      $region45: #{tpu_custom_call.1} parent=5 // pred_check
        _
      $region46: #{tpu_custom_call.1} parent=5 // pred_check_branch
        %250 = sbr.rel (%p247) target = $region48
      $region47: #{tpu_custom_call.1} parent=5 // pred_region
        %s251 = ssub.s32 %s13, 1
        %s252 = smul.u32 63, %s18
        %s253 = ssub.s32 125, %s252
        %p254 = scmp.lt.s32.totalorder %s253, 63
        %s255 = scalar_select %p254, %s253, 63
        %s256 = smul.u32 128, %s255
        %p257 = scmp.lt.s32.totalorder %s252, 124
        %s258 = scalar_select %p257, %s252, 124
        %s259 = smul.addr %s258, 8
        %s260 = scalar_lea.vmem %s0, %s259
        %p261 = pneg %p39
        %p262 = pneg %p36
        %p263 = pneg %p60
        %p264 = pneg %p57
        %p265 = pneg %p81
        %p266 = pneg %p78
        %p267 = pneg %p102
        %p268 = pneg %p99
        %p269 = pneg %p123
        %p270 = pneg %p120
        %p271 = pneg %p144
        %p272 = pneg %p141
        %p273 = pneg %p165
        %p274 = pneg %p162
        %p275 = pneg %p191
        %p276 = pneg %p188
        %s277 = sand.u32 %s178, 1
        %s278 = sand.u32 %s178, 1
        %s279 = smul.addr %s278, 504
        %s280 = scalar_lea.vmem [#allocation2], %s279
        %s281 = smul.u32 63, %s18
        %s282 = ssub.s32 125, %s281
        %p283 = scmp.lt.s32.totalorder %s282, 63
        %s284 = scalar_select %p283, %s282, 63
        %s285 = smul.u32 128, %s284
        %p286 = scmp.lt.s32.totalorder %s281, 124
        %s287 = scalar_select %p286, %s281, 124
        %s288 = smul.addr %s287, 8
        %s289 = scalar_lea.vmem %s0, %s288
        %s290 = smul.u32 63, %s18
        %s291 = ssub.s32 125, %s290
        %p292 = scmp.lt.s32.totalorder %s291, 63
        %s293 = scalar_select %p292, %s291, 63
        %s294 = smul.u32 128, %s293
        %s295 = smul.u32 63, %s18
        %s296 = ssub.s32 125, %s295
        %p297 = scmp.lt.s32.totalorder %s296, 63
        %s298 = scalar_select %p297, %s296, 63
        %s299 = smul.u32 128, %s298
        %v301 = vld [vmem:[%s289] sm:$0xff]
        %v302 = vld [vmem:[%s289 + $0x8] sm:$0xff]
        %v303 = vld [vmem:[%s289 + $0x10] sm:$0xff]
        %v304 = vld [vmem:[%s289 + $0x18] sm:$0xff]
        %v305 = vld [vmem:[%s289 + $0x20] sm:$0xff]
        %v306 = vld [vmem:[%s289 + $0x28] sm:$0xff]
        %v307 = vld [vmem:[%s289 + $0x30] sm:$0xff]
        %v308 = vld [vmem:[%s289 + $0x38] sm:$0xff]
        %v309 = vld [vmem:[%s289 + $0x40] sm:$0xff]
        %v310 = vld [vmem:[%s289 + $0x48] sm:$0xff]
        %v311 = vld [vmem:[%s289 + $0x50] sm:$0xff]
        %v312 = vld [vmem:[%s289 + $0x58] sm:$0xff]
        %v313 = vld [vmem:[%s289 + $0x60] sm:$0xff]
        %v314 = vld [vmem:[%s289 + $0x68] sm:$0xff]
        %v315 = vld [vmem:[%s289 + $0x70] sm:$0xff]
        %v316 = vld [vmem:[%s289 + $0x78] sm:$0xff]
        %v317 = vld [vmem:[%s289 + $0x80] sm:$0xff]
        %v318 = vld [vmem:[%s289 + $0x88] sm:$0xff]
        %v319 = vld [vmem:[%s289 + $0x90] sm:$0xff]
        %v320 = vld [vmem:[%s289 + $0x98] sm:$0xff]
        %v321 = vld [vmem:[%s289 + $0xa0] sm:$0xff]
        %v322 = vld [vmem:[%s289 + $0xa8] sm:$0xff]
        %v323 = vld [vmem:[%s289 + $0xb0] sm:$0xff]
        %v324 = vld [vmem:[%s289 + $0xb8] sm:$0xff]
        %v325 = vld [vmem:[%s289 + $0xc0] sm:$0xff]
        %v326 = vld [vmem:[%s289 + $0xc8] sm:$0xff]
        %v327 = vld [vmem:[%s289 + $0xd0] sm:$0xff]
        %v328 = vld [vmem:[%s289 + $0xd8] sm:$0xff]
        %v329 = vld [vmem:[%s289 + $0xe0] sm:$0xff]
        %v330 = vld [vmem:[%s289 + $0xe8] sm:$0xff]
        %v331 = vld [vmem:[%s289 + $0xf0] sm:$0xff]
        %v332 = vld [vmem:[%s289 + $0xf8] sm:$0xff]
        %v333 = vld [vmem:[%s289 + $0x100] sm:$0xff]
        %v334 = vld [vmem:[%s289 + $0x108] sm:$0xff]
        %v335 = vld [vmem:[%s289 + $0x110] sm:$0xff]
        %v336 = vld [vmem:[%s289 + $0x118] sm:$0xff]
        %v337 = vld [vmem:[%s289 + $0x120] sm:$0xff]
        %v338 = vld [vmem:[%s289 + $0x128] sm:$0xff]
        %v339 = vld [vmem:[%s289 + $0x130] sm:$0xff]
        %v340 = vld [vmem:[%s289 + $0x138] sm:$0xff]
        %v341 = vld [vmem:[%s289 + $0x140] sm:$0xff]
        %v342 = vld [vmem:[%s289 + $0x148] sm:$0xff]
        %v343 = vld [vmem:[%s289 + $0x150] sm:$0xff]
        %v344 = vld [vmem:[%s289 + $0x158] sm:$0xff]
        %v345 = vld [vmem:[%s289 + $0x160] sm:$0xff]
        %v346 = vld [vmem:[%s289 + $0x168] sm:$0xff]
        %v347 = vld [vmem:[%s289 + $0x170] sm:$0xff]
        %v348 = vld [vmem:[%s289 + $0x178] sm:$0xff]
        %v349 = vld [vmem:[%s289 + $0x180] sm:$0xff]
        %v350 = vld [vmem:[%s289 + $0x188] sm:$0xff]
        %v351 = vld [vmem:[%s289 + $0x190] sm:$0xff]
        %v352 = vld [vmem:[%s289 + $0x198] sm:$0xff]
        %v353 = vld [vmem:[%s289 + $0x1a0] sm:$0xff]
        %v354 = vld [vmem:[%s289 + $0x1a8] sm:$0xff]
        %v355 = vld [vmem:[%s289 + $0x1b0] sm:$0xff]
        %v356 = vld [vmem:[%s289 + $0x1b8] sm:$0xff]
        %v357 = vld [vmem:[%s289 + $0x1c0] sm:$0xff]
        %v358 = vld [vmem:[%s289 + $0x1c8] sm:$0xff]
        %v359 = vld [vmem:[%s289 + $0x1d0] sm:$0xff]
        %v360 = vld [vmem:[%s289 + $0x1d8] sm:$0xff]
        %v361 = vld [vmem:[%s289 + $0x1e0] sm:$0xff]
        %v362 = vld [vmem:[%s289 + $0x1e8] sm:$0xff]
        %v363 = vld [vmem:[%s289 + $0x1f0] sm:$0xff]
        %v364 = vpack.c.bf16 %v302, %v301
        %v365 = vpack.c.bf16 %v304, %v303
        %v366 = vpack.c.bf16 %v306, %v305
        %v367 = vpack.c.bf16 %v308, %v307
        %v368 = vpack.c.bf16 %v310, %v309
        %v369 = vpack.c.bf16 %v312, %v311
        %v370 = vpack.c.bf16 %v314, %v313
        %v371 = vpack.c.bf16 %v316, %v315
        %v372 = vpack.c.bf16 %v318, %v317
        %v373 = vpack.c.bf16 %v320, %v319
        %v374 = vpack.c.bf16 %v322, %v321
        %v375 = vpack.c.bf16 %v324, %v323
        %v376 = vpack.c.bf16 %v326, %v325
        %v377 = vpack.c.bf16 %v328, %v327
        %v378 = vpack.c.bf16 %v330, %v329
        %v379 = vpack.c.bf16 %v332, %v331
        %v380 = vpack.c.bf16 %v334, %v333
        %v381 = vpack.c.bf16 %v336, %v335
        %v382 = vpack.c.bf16 %v338, %v337
        %v383 = vpack.c.bf16 %v340, %v339
        %v384 = vpack.c.bf16 %v342, %v341
        %v385 = vpack.c.bf16 %v344, %v343
        %v386 = vpack.c.bf16 %v346, %v345
        %v387 = vpack.c.bf16 %v348, %v347
        %v388 = vpack.c.bf16 %v350, %v349
        %v389 = vpack.c.bf16 %v352, %v351
        %v390 = vpack.c.bf16 %v354, %v353
        %v391 = vpack.c.bf16 %v356, %v355
        %v392 = vpack.c.bf16 %v358, %v357
        %v393 = vpack.c.bf16 %v360, %v359
        %v394 = vpack.c.bf16 %v362, %v361
        %v395 = vpack.c.bf16 %v363, %v363
        %v396 = vld [vmem:[%s1] sm:$0xf]
        %v397 = vld [vmem:[%s1 + $0x4] sm:$0xf]
        %v398 = vld [vmem:[%s1 + $0x8] sm:$0xf]
        %v399 = vld [vmem:[%s1 + $0xc] sm:$0xf]
        %v400 = vld [vmem:[%s2] sm:$0x1]
        %v402 = vlaneseq
        %v403 = vshrl.u32 %v402, 7
        %v404 = vsub.s32 0, %v403
        %v405 = vrot.slane %v400, %v404
        %v411 = vunpack.c.l.b16 %v396
        %v412 = vunpack.c.l.b16 %v397
        %v413 = vunpack.c.l.b16 %v398
        %v414 = vunpack.c.l.b16 %v399
        %v415 = vpack.c.b16 %v412, %v411
        %v416 = vpack.c.b16 %v414, %v413
        %vm419 = vcmask 261120
        %v421 = vsel %vm419, %v364, 0
        %v424 = vsel %vm419, %v365, 0
        %v427 = vsel %vm419, %v366, 0
        %v430 = vsel %vm419, %v367, 0
        %v433 = vsel %vm419, %v368, 0
        %v436 = vsel %vm419, %v369, 0
        %v439 = vsel %vm419, %v370, 0
        %v442 = vsel %vm419, %v371, 0
        %v445 = vsel %vm419, %v372, 0
        %v448 = vsel %vm419, %v373, 0
        %v451 = vsel %vm419, %v374, 0
        %v454 = vsel %vm419, %v375, 0
        %v457 = vsel %vm419, %v376, 0
        %v460 = vsel %vm419, %v377, 0
        %v463 = vsel %vm419, %v378, 0
        %v466 = vsel %vm419, %v379, 0
        %v469 = vsel %vm419, %v380, 0
        %v472 = vsel %vm419, %v381, 0
        %v475 = vsel %vm419, %v382, 0
        %v478 = vsel %vm419, %v383, 0
        %v481 = vsel %vm419, %v384, 0
        %v484 = vsel %vm419, %v385, 0
        %v487 = vsel %vm419, %v386, 0
        %v490 = vsel %vm419, %v387, 0
        %v493 = vsel %vm419, %v388, 0
        %v496 = vsel %vm419, %v389, 0
        %v499 = vsel %vm419, %v390, 0
        %v502 = vsel %vm419, %v391, 0
        %v505 = vsel %vm419, %v392, 0
        %v508 = vsel %vm419, %v393, 0
        %v511 = vsel %vm419, %v394, 0
        %v514 = vsel %vm419, %v395, 0
        %516 = vmatprep.subr.bf16.mxu0 0
        %517 = vmatpush1.bf16.msra.mxu0 %v415
        %518 = vmatprep.subr.bf16.mxu0 0
        %519 = vmatpush1.bf16.msra.mxu0 %v416
        %520 = vmatprep.subr.bf16.mxu0 0
        %521 = vmatpush1.bf16.msra.mxu0 0
        %522 = vmatprep.subr.bf16.mxu0 0
        %523 = vmatpush1.bf16.msra.mxu0 0
        %524 = vmatprep.subr.bf16.mxu0 0
        %525 = vmatpush1.bf16.msra.mxu0 0
        %526 = vmatprep.subr.bf16.mxu0 0
        %527 = vmatpush1.bf16.msra.mxu0 0
        %528 = vmatprep.subr.bf16.mxu0 0
        %529 = vmatpush1.bf16.msra.mxu0 0
        %530 = vmatprep.subr.bf16.mxu0 0
        %531 = vmatpush1.bf16.msra.mxu0 0
        %532 = vmatprep.subr.bf16.mxu0 0
        %533 = vmatpush1.bf16.msra.mxu0 0
        %534 = vmatprep.subr.bf16.mxu0 0
        %535 = vmatpush1.bf16.msra.mxu0 0
        %536 = vmatprep.subr.bf16.mxu0 0
        %537 = vmatpush1.bf16.msra.mxu0 0
        %538 = vmatprep.subr.bf16.mxu0 0
        %539 = vmatpush1.bf16.msra.mxu0 0
        %540 = vmatprep.subr.bf16.mxu0 0
        %541 = vmatpush1.bf16.msra.mxu0 0
        %542 = vmatprep.subr.bf16.mxu0 0
        %543 = vmatpush1.bf16.msra.mxu0 0
        %544 = vmatprep.subr.bf16.mxu0 0
        %545 = vmatpush1.bf16.msra.mxu0 0
        %546 = vmatprep.subr.bf16.mxu0 0
        %547 = vmatpush1.bf16.msra.mxu0 0
        %548 = vmatprep.mubr.bf16.mxu0 0
        %549 = vmatmul.mubr.bf16.gmra.mrb[0].mxu0 %v421
        %v550 = vpop.f32.mrb[0].mxu0
        %v551 = vadd.f32 %v405, %v550
        %v552 = vpop.f32.mrb[0].mxu0
        %v553 = vpop.f32.mrb[0].mxu0
        %v554 = vadd.f32 %v405, %v553
        %v555 = vpop.f32.mrb[0].mxu0
        %556 = vmatprep.mubr.bf16.mxu0 0
        %557 = vmatmul.mubr.bf16.gmra.mrb[0].mxu0 %v424
        %v558 = vpop.f32.mrb[0].mxu0
        %v559 = vadd.f32 %v405, %v558
        %v560 = vpop.f32.mrb[0].mxu0
        %v561 = vpop.f32.mrb[0].mxu0
        %v562 = vadd.f32 %v405, %v561
        %v563 = vpop.f32.mrb[0].mxu0
        %564 = vmatprep.mubr.bf16.mxu0 0
        %565 = vmatmul.mubr.bf16.gmra.mrb[0].mxu0 %v427
        %v566 = vpop.f32.mrb[0].mxu0
        %v567 = vadd.f32 %v405, %v566
        %v568 = vpop.f32.mrb[0].mxu0
        %v569 = vpop.f32.mrb[0].mxu0
        %v570 = vadd.f32 %v405, %v569
        %v571 = vpop.f32.mrb[0].mxu0
        %572 = vmatprep.mubr.bf16.mxu0 0
        %573 = vmatmul.mubr.bf16.gmra.mrb[0].mxu0 %v430
        %v574 = vpop.f32.mrb[0].mxu0
        %v575 = vadd.f32 %v405, %v574
        %v576 = vpop.f32.mrb[0].mxu0
        %v577 = vpop.f32.mrb[0].mxu0
        %v578 = vadd.f32 %v405, %v577
        %v579 = vpop.f32.mrb[0].mxu0
        %580 = vmatprep.mubr.bf16.mxu0 0
        %581 = vmatmul.mubr.bf16.gmra.mrb[0].mxu0 %v433
        %v582 = vpop.f32.mrb[0].mxu0
        %v583 = vadd.f32 %v405, %v582
        %v584 = vpop.f32.mrb[0].mxu0
        %v585 = vpop.f32.mrb[0].mxu0
        %v586 = vadd.f32 %v405, %v585
        %v587 = vpop.f32.mrb[0].mxu0
        %588 = vmatprep.mubr.bf16.mxu0 0
        %589 = vmatmul.mubr.bf16.gmra.mrb[0].mxu0 %v436
        %v590 = vpop.f32.mrb[0].mxu0
        %v591 = vadd.f32 %v405, %v590
        %v592 = vpop.f32.mrb[0].mxu0
        %v593 = vpop.f32.mrb[0].mxu0
        %v594 = vadd.f32 %v405, %v593
        %v595 = vpop.f32.mrb[0].mxu0
        %596 = vmatprep.mubr.bf16.mxu0 0
        %597 = vmatmul.mubr.bf16.gmra.mrb[0].mxu0 %v439
        %v598 = vpop.f32.mrb[0].mxu0
        %v599 = vadd.f32 %v405, %v598
        %v600 = vpop.f32.mrb[0].mxu0
        %v601 = vpop.f32.mrb[0].mxu0
        %v602 = vadd.f32 %v405, %v601
        %v603 = vpop.f32.mrb[0].mxu0
        %604 = vmatprep.mubr.bf16.mxu0 0
        %605 = vmatmul.mubr.bf16.gmra.mrb[0].mxu0 %v442
        %v606 = vpop.f32.mrb[0].mxu0
        %v607 = vadd.f32 %v405, %v606
        %v608 = vpop.f32.mrb[0].mxu0
        %v609 = vpop.f32.mrb[0].mxu0
        %v610 = vadd.f32 %v405, %v609
        %v611 = vpop.f32.mrb[0].mxu0
        %612 = vmatprep.mubr.bf16.mxu0 0
        %613 = vmatmul.mubr.bf16.gmra.mrb[0].mxu0 %v445
        %v614 = vpop.f32.mrb[0].mxu0
        %v615 = vadd.f32 %v405, %v614
        %v616 = vpop.f32.mrb[0].mxu0
        %v617 = vpop.f32.mrb[0].mxu0
        %v618 = vadd.f32 %v405, %v617
        %v619 = vpop.f32.mrb[0].mxu0
        %620 = vmatprep.mubr.bf16.mxu0 0
        %621 = vmatmul.mubr.bf16.gmra.mrb[0].mxu0 %v448
        %v622 = vpop.f32.mrb[0].mxu0
        %v623 = vadd.f32 %v405, %v622
        %v624 = vpop.f32.mrb[0].mxu0
        %v625 = vpop.f32.mrb[0].mxu0
        %v626 = vadd.f32 %v405, %v625
        %v627 = vpop.f32.mrb[0].mxu0
        %628 = vmatprep.mubr.bf16.mxu0 0
        %629 = vmatmul.mubr.bf16.gmra.mrb[0].mxu0 %v451
        %v630 = vpop.f32.mrb[0].mxu0
        %v631 = vadd.f32 %v405, %v630
        %v632 = vpop.f32.mrb[0].mxu0
        %v633 = vpop.f32.mrb[0].mxu0
        %v634 = vadd.f32 %v405, %v633
        %v635 = vpop.f32.mrb[0].mxu0
        %636 = vmatprep.mubr.bf16.mxu0 0
        %637 = vmatmul.mubr.bf16.gmra.mrb[0].mxu0 %v454
        %v638 = vpop.f32.mrb[0].mxu0
        %v639 = vadd.f32 %v405, %v638
        %v640 = vpop.f32.mrb[0].mxu0
        %v641 = vpop.f32.mrb[0].mxu0
        %v642 = vadd.f32 %v405, %v641
        %v643 = vpop.f32.mrb[0].mxu0
        %644 = vmatprep.mubr.bf16.mxu0 0
        %645 = vmatmul.mubr.bf16.gmra.mrb[0].mxu0 %v457
        %v646 = vpop.f32.mrb[0].mxu0
        %v647 = vadd.f32 %v405, %v646
        %v648 = vpop.f32.mrb[0].mxu0
        %v649 = vpop.f32.mrb[0].mxu0
        %v650 = vadd.f32 %v405, %v649
        %v651 = vpop.f32.mrb[0].mxu0
        %652 = vmatprep.mubr.bf16.mxu0 0
        %653 = vmatmul.mubr.bf16.gmra.mrb[0].mxu0 %v460
        %v654 = vpop.f32.mrb[0].mxu0
        %v655 = vadd.f32 %v405, %v654
        %v656 = vpop.f32.mrb[0].mxu0
        %v657 = vpop.f32.mrb[0].mxu0
        %v658 = vadd.f32 %v405, %v657
        %v659 = vpop.f32.mrb[0].mxu0
        %660 = vmatprep.mubr.bf16.mxu0 0
        %661 = vmatmul.mubr.bf16.gmra.mrb[0].mxu0 %v463
        %v662 = vpop.f32.mrb[0].mxu0
        %v663 = vadd.f32 %v405, %v662
        %v664 = vpop.f32.mrb[0].mxu0
        %v665 = vpop.f32.mrb[0].mxu0
        %v666 = vadd.f32 %v405, %v665
        %v667 = vpop.f32.mrb[0].mxu0
        %668 = vmatprep.mubr.bf16.mxu0 0
        %669 = vmatmul.mubr.bf16.gmra.mrb[0].mxu0 %v466
        %v670 = vpop.f32.mrb[0].mxu0
        %v671 = vadd.f32 %v405, %v670
        %v672 = vpop.f32.mrb[0].mxu0
        %v673 = vpop.f32.mrb[0].mxu0
        %v674 = vadd.f32 %v405, %v673
        %v675 = vpop.f32.mrb[0].mxu0
        %676 = vmatprep.mubr.bf16.mxu0 0
        %677 = vmatmul.mubr.bf16.gmra.mrb[0].mxu0 %v469
        %v678 = vpop.f32.mrb[0].mxu0
        %v679 = vadd.f32 %v405, %v678
        %v680 = vpop.f32.mrb[0].mxu0
        %v681 = vpop.f32.mrb[0].mxu0
        %v682 = vadd.f32 %v405, %v681
        %v683 = vpop.f32.mrb[0].mxu0
        %684 = vmatprep.mubr.bf16.mxu0 0
        %685 = vmatmul.mubr.bf16.gmra.mrb[0].mxu0 %v472
        %v686 = vpop.f32.mrb[0].mxu0
        %v687 = vadd.f32 %v405, %v686
        %v688 = vpop.f32.mrb[0].mxu0
        %v689 = vpop.f32.mrb[0].mxu0
        %v690 = vadd.f32 %v405, %v689
        %v691 = vpop.f32.mrb[0].mxu0
        %692 = vmatprep.mubr.bf16.mxu0 0
        %693 = vmatmul.mubr.bf16.gmra.mrb[0].mxu0 %v475
        %v694 = vpop.f32.mrb[0].mxu0
        %v695 = vadd.f32 %v405, %v694
        %v696 = vpop.f32.mrb[0].mxu0
        %v697 = vpop.f32.mrb[0].mxu0
        %v698 = vadd.f32 %v405, %v697
        %v699 = vpop.f32.mrb[0].mxu0
        %700 = vmatprep.mubr.bf16.mxu0 0
        %701 = vmatmul.mubr.bf16.gmra.mrb[0].mxu0 %v478
        %v702 = vpop.f32.mrb[0].mxu0
        %v703 = vadd.f32 %v405, %v702
        %v704 = vpop.f32.mrb[0].mxu0
        %v705 = vpop.f32.mrb[0].mxu0
        %v706 = vadd.f32 %v405, %v705
        %v707 = vpop.f32.mrb[0].mxu0
        %708 = vmatprep.mubr.bf16.mxu0 0
        %709 = vmatmul.mubr.bf16.gmra.mrb[0].mxu0 %v481
        %v710 = vpop.f32.mrb[0].mxu0
        %v711 = vadd.f32 %v405, %v710
        %v712 = vpop.f32.mrb[0].mxu0
        %v713 = vpop.f32.mrb[0].mxu0
        %v714 = vadd.f32 %v405, %v713
        %v715 = vpop.f32.mrb[0].mxu0
        %716 = vmatprep.mubr.bf16.mxu0 0
        %717 = vmatmul.mubr.bf16.gmra.mrb[0].mxu0 %v484
        %v718 = vpop.f32.mrb[0].mxu0
        %v719 = vadd.f32 %v405, %v718
        %v720 = vpop.f32.mrb[0].mxu0
        %v721 = vpop.f32.mrb[0].mxu0
        %v722 = vadd.f32 %v405, %v721
        %v723 = vpop.f32.mrb[0].mxu0
        %724 = vmatprep.mubr.bf16.mxu0 0
        %725 = vmatmul.mubr.bf16.gmra.mrb[0].mxu0 %v487
        %v726 = vpop.f32.mrb[0].mxu0
        %v727 = vadd.f32 %v405, %v726
        %v728 = vpop.f32.mrb[0].mxu0
        %v729 = vpop.f32.mrb[0].mxu0
        %v730 = vadd.f32 %v405, %v729
        %v731 = vpop.f32.mrb[0].mxu0
        %732 = vmatprep.mubr.bf16.mxu0 0
        %733 = vmatmul.mubr.bf16.gmra.mrb[0].mxu0 %v490
        %v734 = vpop.f32.mrb[0].mxu0
        %v735 = vadd.f32 %v405, %v734
        %v736 = vpop.f32.mrb[0].mxu0
        %v737 = vpop.f32.mrb[0].mxu0
        %v738 = vadd.f32 %v405, %v737
        %v739 = vpop.f32.mrb[0].mxu0
        %740 = vmatprep.mubr.bf16.mxu0 0
        %741 = vmatmul.mubr.bf16.gmra.mrb[0].mxu0 %v493
        %v742 = vpop.f32.mrb[0].mxu0
        %v743 = vadd.f32 %v405, %v742
        %v744 = vpop.f32.mrb[0].mxu0
        %v745 = vpop.f32.mrb[0].mxu0
        %v746 = vadd.f32 %v405, %v745
        %v747 = vpop.f32.mrb[0].mxu0
        %748 = vmatprep.mubr.bf16.mxu0 0
        %749 = vmatmul.mubr.bf16.gmra.mrb[0].mxu0 %v496
        %v750 = vpop.f32.mrb[0].mxu0
        %v751 = vadd.f32 %v405, %v750
        %v752 = vpop.f32.mrb[0].mxu0
        %v753 = vpop.f32.mrb[0].mxu0
        %v754 = vadd.f32 %v405, %v753
        %v755 = vpop.f32.mrb[0].mxu0
        %756 = vmatprep.mubr.bf16.mxu0 0
        %757 = vmatmul.mubr.bf16.gmra.mrb[0].mxu0 %v499
        %v758 = vpop.f32.mrb[0].mxu0
        %v759 = vadd.f32 %v405, %v758
        %v760 = vpop.f32.mrb[0].mxu0
        %v761 = vpop.f32.mrb[0].mxu0
        %v762 = vadd.f32 %v405, %v761
        %v763 = vpop.f32.mrb[0].mxu0
        %764 = vmatprep.mubr.bf16.mxu0 0
        %765 = vmatmul.mubr.bf16.gmra.mrb[0].mxu0 %v502
        %v766 = vpop.f32.mrb[0].mxu0
        %v767 = vadd.f32 %v405, %v766
        %v768 = vpop.f32.mrb[0].mxu0
        %v769 = vpop.f32.mrb[0].mxu0
        %v770 = vadd.f32 %v405, %v769
        %v771 = vpop.f32.mrb[0].mxu0
        %772 = vmatprep.mubr.bf16.mxu0 0
        %773 = vmatmul.mubr.bf16.gmra.mrb[0].mxu0 %v505
        %v774 = vpop.f32.mrb[0].mxu0
        %v775 = vadd.f32 %v405, %v774
        %v776 = vpop.f32.mrb[0].mxu0
        %v777 = vpop.f32.mrb[0].mxu0
        %v778 = vadd.f32 %v405, %v777
        %v779 = vpop.f32.mrb[0].mxu0
        %780 = vmatprep.mubr.bf16.mxu0 0
        %781 = vmatmul.mubr.bf16.gmra.mrb[0].mxu0 %v508
        %v782 = vpop.f32.mrb[0].mxu0
        %v783 = vadd.f32 %v405, %v782
        %v784 = vpop.f32.mrb[0].mxu0
        %v785 = vpop.f32.mrb[0].mxu0
        %v786 = vadd.f32 %v405, %v785
        %v787 = vpop.f32.mrb[0].mxu0
        %788 = vmatprep.mubr.bf16.mxu0 0
        %789 = vmatmul.mubr.bf16.gmra.mrb[0].mxu0 %v511
        %v790 = vpop.f32.mrb[0].mxu0
        %v791 = vadd.f32 %v405, %v790
        %v792 = vpop.f32.mrb[0].mxu0
        %v793 = vpop.f32.mrb[0].mxu0
        %v794 = vadd.f32 %v405, %v793
        %v795 = vpop.f32.mrb[0].mxu0
        %796 = vmatprep.mubr.bf16.mxu0 0
        %797 = vmatmul.mubr.bf16.gmra.mrb[0].mxu0 %v514
        %v798 = vpop.f32.mrb[0].mxu0
        %v799 = vadd.f32 %v405, %v798
        %v800 = vpop.f32.mrb[0].mxu0
        %v801 = vpop.f32.mrb[0].mxu0
        %v802 = vpop.f32.mrb[0].mxu0
        %803 = vdwg.mxu0
        %v804 = vmax.f32 %v551, 0.0
        %v805 = vmax.f32 %v554, 0.0
        %v806 = vmax.f32 %v559, 0.0
        %v807 = vmax.f32 %v562, 0.0
        %v808 = vmax.f32 %v567, 0.0
        %v809 = vmax.f32 %v570, 0.0
        %v810 = vmax.f32 %v575, 0.0
        %v811 = vmax.f32 %v578, 0.0
        %v812 = vmax.f32 %v583, 0.0
        %v813 = vmax.f32 %v586, 0.0
        %v814 = vmax.f32 %v591, 0.0
        %v815 = vmax.f32 %v594, 0.0
        %v816 = vmax.f32 %v599, 0.0
        %v817 = vmax.f32 %v602, 0.0
        %v818 = vmax.f32 %v607, 0.0
        %v819 = vmax.f32 %v610, 0.0
        %v820 = vmax.f32 %v615, 0.0
        %v821 = vmax.f32 %v618, 0.0
        %v822 = vmax.f32 %v623, 0.0
        %v823 = vmax.f32 %v626, 0.0
        %v824 = vmax.f32 %v631, 0.0
        %v825 = vmax.f32 %v634, 0.0
        %v826 = vmax.f32 %v639, 0.0
        %v827 = vmax.f32 %v642, 0.0
        %v828 = vmax.f32 %v647, 0.0
        %v829 = vmax.f32 %v650, 0.0
        %v830 = vmax.f32 %v655, 0.0
        %v831 = vmax.f32 %v658, 0.0
        %v832 = vmax.f32 %v663, 0.0
        %v833 = vmax.f32 %v666, 0.0
        %v834 = vmax.f32 %v671, 0.0
        %v835 = vmax.f32 %v674, 0.0
        %v836 = vmax.f32 %v679, 0.0
        %v837 = vmax.f32 %v682, 0.0
        %v838 = vmax.f32 %v687, 0.0
        %v839 = vmax.f32 %v690, 0.0
        %v840 = vmax.f32 %v695, 0.0
        %v841 = vmax.f32 %v698, 0.0
        %v842 = vmax.f32 %v703, 0.0
        %v843 = vmax.f32 %v706, 0.0
        %v844 = vmax.f32 %v711, 0.0
        %v845 = vmax.f32 %v714, 0.0
        %v846 = vmax.f32 %v719, 0.0
        %v847 = vmax.f32 %v722, 0.0
        %v848 = vmax.f32 %v727, 0.0
        %v849 = vmax.f32 %v730, 0.0
        %v850 = vmax.f32 %v735, 0.0
        %v851 = vmax.f32 %v738, 0.0
        %v852 = vmax.f32 %v743, 0.0
        %v853 = vmax.f32 %v746, 0.0
        %v854 = vmax.f32 %v751, 0.0
        %v855 = vmax.f32 %v754, 0.0
        %v856 = vmax.f32 %v759, 0.0
        %v857 = vmax.f32 %v762, 0.0
        %v858 = vmax.f32 %v767, 0.0
        %v859 = vmax.f32 %v770, 0.0
        %v860 = vmax.f32 %v775, 0.0
        %v861 = vmax.f32 %v778, 0.0
        %v862 = vmax.f32 %v783, 0.0
        %v863 = vmax.f32 %v786, 0.0
        %v864 = vmax.f32 %v791, 0.0
        %v865 = vmax.f32 %v794, 0.0
        %v866 = vmax.f32 %v799, 0.0
        %v867 = vpack.c.bf16 %v805, %v804
        %v868 = vpack.c.bf16 %v807, %v806
        %v869 = vpack.c.bf16 %v809, %v808
        %v870 = vpack.c.bf16 %v811, %v810
        %v871 = vpack.c.bf16 %v813, %v812
        %v872 = vpack.c.bf16 %v815, %v814
        %v873 = vpack.c.bf16 %v817, %v816
        %v874 = vpack.c.bf16 %v819, %v818
        %v875 = vpack.c.bf16 %v821, %v820
        %v876 = vpack.c.bf16 %v823, %v822
        %v877 = vpack.c.bf16 %v825, %v824
        %v878 = vpack.c.bf16 %v827, %v826
        %v879 = vpack.c.bf16 %v829, %v828
        %v880 = vpack.c.bf16 %v831, %v830
        %v881 = vpack.c.bf16 %v833, %v832
        %v882 = vpack.c.bf16 %v835, %v834
        %v883 = vpack.c.bf16 %v837, %v836
        %v884 = vpack.c.bf16 %v839, %v838
        %v885 = vpack.c.bf16 %v841, %v840
        %v886 = vpack.c.bf16 %v843, %v842
        %v887 = vpack.c.bf16 %v845, %v844
        %v888 = vpack.c.bf16 %v847, %v846
        %v889 = vpack.c.bf16 %v849, %v848
        %v890 = vpack.c.bf16 %v851, %v850
        %v891 = vpack.c.bf16 %v853, %v852
        %v892 = vpack.c.bf16 %v855, %v854
        %v893 = vpack.c.bf16 %v857, %v856
        %v894 = vpack.c.bf16 %v859, %v858
        %v895 = vpack.c.bf16 %v861, %v860
        %v896 = vpack.c.bf16 %v863, %v862
        %v897 = vpack.c.bf16 %v865, %v864
        %v898 = vpack.c.bf16 %v866, %v866
        %v899 = vld [vmem:[%s3] sm:$0xf]
        %v900 = vld [vmem:[%s3 + $0x4] sm:$0xf]
        %v901 = vld [vmem:[%s3 + $0x8] sm:$0xf]
        %v902 = vld [vmem:[%s3 + $0xc] sm:$0xf]
        %v903 = vld [vmem:[%s3 + $0x10] sm:$0xf]
        %v904 = vld [vmem:[%s3 + $0x14] sm:$0xf]
        %v905 = vld [vmem:[%s3 + $0x18] sm:$0xf]
        %v906 = vld [vmem:[%s3 + $0x1c] sm:$0xf]
        %v907 = vld [vmem:[%s3 + $0x20] sm:$0xf]
        %v908 = vld [vmem:[%s3 + $0x24] sm:$0xf]
        %v909 = vld [vmem:[%s3 + $0x28] sm:$0xf]
        %v910 = vld [vmem:[%s3 + $0x2c] sm:$0xf]
        %v911 = vld [vmem:[%s3 + $0x30] sm:$0xf]
        %v912 = vld [vmem:[%s3 + $0x34] sm:$0xf]
        %v913 = vld [vmem:[%s3 + $0x38] sm:$0xf]
        %v914 = vld [vmem:[%s3 + $0x3c] sm:$0xf]
        %v915 = vld [vmem:[%s4] sm:$0x1]
        %v917 = vlaneseq
        %v918 = vshrl.u32 %v917, 7
        %v919 = vsub.s32 0, %v918
        %v920 = vrot.slane %v915, %v919
        %v938 = vunpack.c.l.b16 %v899
        %v939 = vunpack.c.l.b16 %v900
        %v940 = vunpack.c.l.b16 %v901
        %v941 = vunpack.c.l.b16 %v902
        %v942 = vunpack.c.l.b16 %v903
        %v943 = vunpack.c.l.b16 %v904
        %v944 = vunpack.c.l.b16 %v905
        %v945 = vunpack.c.l.b16 %v906
        %v946 = vunpack.c.l.b16 %v907
        %v947 = vunpack.c.l.b16 %v908
        %v948 = vunpack.c.l.b16 %v909
        %v949 = vunpack.c.l.b16 %v910
        %v950 = vunpack.c.l.b16 %v911
        %v951 = vunpack.c.l.b16 %v912
        %v952 = vunpack.c.l.b16 %v913
        %v953 = vunpack.c.l.b16 %v914
        %v954 = vpack.c.b16 %v939, %v938
        %v955 = vpack.c.b16 %v941, %v940
        %v956 = vpack.c.b16 %v943, %v942
        %v957 = vpack.c.b16 %v945, %v944
        %v958 = vpack.c.b16 %v947, %v946
        %v959 = vpack.c.b16 %v949, %v948
        %v960 = vpack.c.b16 %v951, %v950
        %v961 = vpack.c.b16 %v953, %v952
        %970 = vmatprep.subr.bf16.mxu0 0
        %971 = vmatpush1.bf16.msra.mxu0 %v954
        %972 = vmatprep.subr.bf16.mxu0 0
        %973 = vmatpush1.bf16.msra.mxu0 %v955
        %974 = vmatprep.subr.bf16.mxu0 0
        %975 = vmatpush1.bf16.msra.mxu0 %v956
        %976 = vmatprep.subr.bf16.mxu0 0
        %977 = vmatpush1.bf16.msra.mxu0 %v957
        %978 = vmatprep.subr.bf16.mxu0 0
        %979 = vmatpush1.bf16.msra.mxu0 %v958
        %980 = vmatprep.subr.bf16.mxu0 0
        %981 = vmatpush1.bf16.msra.mxu0 %v959
        %982 = vmatprep.subr.bf16.mxu0 0
        %983 = vmatpush1.bf16.msra.mxu0 %v960
        %984 = vmatprep.subr.bf16.mxu0 0
        %985 = vmatpush1.bf16.msra.mxu0 %v961
        %986 = vmatprep.subr.bf16.mxu0 0
        %987 = vmatpush1.bf16.msra.mxu0 0
        %988 = vmatprep.subr.bf16.mxu0 0
        %989 = vmatpush1.bf16.msra.mxu0 0
        %990 = vmatprep.subr.bf16.mxu0 0
        %991 = vmatpush1.bf16.msra.mxu0 0
        %992 = vmatprep.subr.bf16.mxu0 0
        %993 = vmatpush1.bf16.msra.mxu0 0
        %994 = vmatprep.subr.bf16.mxu0 0
        %995 = vmatpush1.bf16.msra.mxu0 0
        %996 = vmatprep.subr.bf16.mxu0 0
        %997 = vmatpush1.bf16.msra.mxu0 0
        %998 = vmatprep.subr.bf16.mxu0 0
        %999 = vmatpush1.bf16.msra.mxu0 0
        %1000 = vmatprep.subr.bf16.mxu0 0
        %1001 = vmatpush1.bf16.msra.mxu0 0
        %1002 = vmatprep.mubr.bf16.mxu0 0
        %1003 = vmatmul.mubr.bf16.gmra.mrb[0].mxu0 %v867
        %v1004 = vpop.f32.mrb[0].mxu0
        %v1005 = vadd.f32 %v920, %v1004
        %v1006 = vpop.f32.mrb[0].mxu0
        %v1007 = vpop.f32.mrb[0].mxu0
        %v1008 = vadd.f32 %v920, %v1007
        %v1009 = vpop.f32.mrb[0].mxu0
        %1010 = vmatprep.mubr.bf16.mxu0 0
        %1011 = vmatmul.mubr.bf16.gmra.mrb[0].mxu0 %v868
        %v1012 = vpop.f32.mrb[0].mxu0
        %v1013 = vadd.f32 %v920, %v1012
        %v1014 = vpop.f32.mrb[0].mxu0
        %v1015 = vpop.f32.mrb[0].mxu0
        %v1016 = vadd.f32 %v920, %v1015
        %v1017 = vpop.f32.mrb[0].mxu0
        %1018 = vmatprep.mubr.bf16.mxu0 0
        %1019 = vmatmul.mubr.bf16.gmra.mrb[0].mxu0 %v869
        %v1020 = vpop.f32.mrb[0].mxu0
        %v1021 = vadd.f32 %v920, %v1020
        %v1022 = vpop.f32.mrb[0].mxu0
        %v1023 = vpop.f32.mrb[0].mxu0
        %v1024 = vadd.f32 %v920, %v1023
        %v1025 = vpop.f32.mrb[0].mxu0
        %1026 = vmatprep.mubr.bf16.mxu0 0
        %1027 = vmatmul.mubr.bf16.gmra.mrb[0].mxu0 %v870
        %v1028 = vpop.f32.mrb[0].mxu0
        %v1029 = vadd.f32 %v920, %v1028
        %v1030 = vpop.f32.mrb[0].mxu0
        %v1031 = vpop.f32.mrb[0].mxu0
        %v1032 = vadd.f32 %v920, %v1031
        %v1033 = vpop.f32.mrb[0].mxu0
        %1034 = vmatprep.mubr.bf16.mxu0 0
        %1035 = vmatmul.mubr.bf16.gmra.mrb[0].mxu0 %v871
        %v1036 = vpop.f32.mrb[0].mxu0
        %v1037 = vadd.f32 %v920, %v1036
        %v1038 = vpop.f32.mrb[0].mxu0
        %v1039 = vpop.f32.mrb[0].mxu0
        %v1040 = vadd.f32 %v920, %v1039
        %v1041 = vpop.f32.mrb[0].mxu0
        %1042 = vmatprep.mubr.bf16.mxu0 0
        %1043 = vmatmul.mubr.bf16.gmra.mrb[0].mxu0 %v872
        %v1044 = vpop.f32.mrb[0].mxu0
        %v1045 = vadd.f32 %v920, %v1044
        %v1046 = vpop.f32.mrb[0].mxu0
        %v1047 = vpop.f32.mrb[0].mxu0
        %v1048 = vadd.f32 %v920, %v1047
        %v1049 = vpop.f32.mrb[0].mxu0
        %1050 = vmatprep.mubr.bf16.mxu0 0
        %1051 = vmatmul.mubr.bf16.gmra.mrb[0].mxu0 %v873
        %v1052 = vpop.f32.mrb[0].mxu0
        %v1053 = vadd.f32 %v920, %v1052
        %v1054 = vpop.f32.mrb[0].mxu0
        %v1055 = vpop.f32.mrb[0].mxu0
        %v1056 = vadd.f32 %v920, %v1055
        %v1057 = vpop.f32.mrb[0].mxu0
        %1058 = vmatprep.mubr.bf16.mxu0 0
        %1059 = vmatmul.mubr.bf16.gmra.mrb[0].mxu0 %v874
        %v1060 = vpop.f32.mrb[0].mxu0
        %v1061 = vadd.f32 %v920, %v1060
        %v1062 = vpop.f32.mrb[0].mxu0
        %v1063 = vpop.f32.mrb[0].mxu0
        %v1064 = vadd.f32 %v920, %v1063
        %v1065 = vpop.f32.mrb[0].mxu0
        %1066 = vmatprep.mubr.bf16.mxu0 0
        %1067 = vmatmul.mubr.bf16.gmra.mrb[0].mxu0 %v875
        %v1068 = vpop.f32.mrb[0].mxu0
        %v1069 = vadd.f32 %v920, %v1068
        %v1070 = vpop.f32.mrb[0].mxu0
        %v1071 = vpop.f32.mrb[0].mxu0
        %v1072 = vadd.f32 %v920, %v1071
        %v1073 = vpop.f32.mrb[0].mxu0
        %1074 = vmatprep.mubr.bf16.mxu0 0
        %1075 = vmatmul.mubr.bf16.gmra.mrb[0].mxu0 %v876
        %v1076 = vpop.f32.mrb[0].mxu0
        %v1077 = vadd.f32 %v920, %v1076
        %v1078 = vpop.f32.mrb[0].mxu0
        %v1079 = vpop.f32.mrb[0].mxu0
        %v1080 = vadd.f32 %v920, %v1079
        %v1081 = vpop.f32.mrb[0].mxu0
        %1082 = vmatprep.mubr.bf16.mxu0 0
        %1083 = vmatmul.mubr.bf16.gmra.mrb[0].mxu0 %v877
        %v1084 = vpop.f32.mrb[0].mxu0
        %v1085 = vadd.f32 %v920, %v1084
        %v1086 = vpop.f32.mrb[0].mxu0
        %v1087 = vpop.f32.mrb[0].mxu0
        %v1088 = vadd.f32 %v920, %v1087
        %v1089 = vpop.f32.mrb[0].mxu0
        %1090 = vmatprep.mubr.bf16.mxu0 0
        %1091 = vmatmul.mubr.bf16.gmra.mrb[0].mxu0 %v878
        %v1092 = vpop.f32.mrb[0].mxu0
        %v1093 = vadd.f32 %v920, %v1092
        %v1094 = vpop.f32.mrb[0].mxu0
        %v1095 = vpop.f32.mrb[0].mxu0
        %v1096 = vadd.f32 %v920, %v1095
        %v1097 = vpop.f32.mrb[0].mxu0
        %1098 = vmatprep.mubr.bf16.mxu0 0
        %1099 = vmatmul.mubr.bf16.gmra.mrb[0].mxu0 %v879
        %v1100 = vpop.f32.mrb[0].mxu0
        %v1101 = vadd.f32 %v920, %v1100
        %v1102 = vpop.f32.mrb[0].mxu0
        %v1103 = vpop.f32.mrb[0].mxu0
        %v1104 = vadd.f32 %v920, %v1103
        %v1105 = vpop.f32.mrb[0].mxu0
        %1106 = vmatprep.mubr.bf16.mxu0 0
        %1107 = vmatmul.mubr.bf16.gmra.mrb[0].mxu0 %v880
        %v1108 = vpop.f32.mrb[0].mxu0
        %v1109 = vadd.f32 %v920, %v1108
        %v1110 = vpop.f32.mrb[0].mxu0
        %v1111 = vpop.f32.mrb[0].mxu0
        %v1112 = vadd.f32 %v920, %v1111
        %v1113 = vpop.f32.mrb[0].mxu0
        %1114 = vmatprep.mubr.bf16.mxu0 0
        %1115 = vmatmul.mubr.bf16.gmra.mrb[0].mxu0 %v881
        %v1116 = vpop.f32.mrb[0].mxu0
        %v1117 = vadd.f32 %v920, %v1116
        %v1118 = vpop.f32.mrb[0].mxu0
        %v1119 = vpop.f32.mrb[0].mxu0
        %v1120 = vadd.f32 %v920, %v1119
        %v1121 = vpop.f32.mrb[0].mxu0
        %1122 = vmatprep.mubr.bf16.mxu0 0
        %1123 = vmatmul.mubr.bf16.gmra.mrb[0].mxu0 %v882
        %v1124 = vpop.f32.mrb[0].mxu0
        %v1125 = vadd.f32 %v920, %v1124
        %v1126 = vpop.f32.mrb[0].mxu0
        %v1127 = vpop.f32.mrb[0].mxu0
        %v1128 = vadd.f32 %v920, %v1127
        %v1129 = vpop.f32.mrb[0].mxu0
        %1130 = vmatprep.mubr.bf16.mxu0 0
        %1131 = vmatmul.mubr.bf16.gmra.mrb[0].mxu0 %v883
        %v1132 = vpop.f32.mrb[0].mxu0
        %v1133 = vadd.f32 %v920, %v1132
        %v1134 = vpop.f32.mrb[0].mxu0
        %v1135 = vpop.f32.mrb[0].mxu0
        %v1136 = vadd.f32 %v920, %v1135
        %v1137 = vpop.f32.mrb[0].mxu0
        %1138 = vmatprep.mubr.bf16.mxu0 0
        %1139 = vmatmul.mubr.bf16.gmra.mrb[0].mxu0 %v884
        %v1140 = vpop.f32.mrb[0].mxu0
        %v1141 = vadd.f32 %v920, %v1140
        %v1142 = vpop.f32.mrb[0].mxu0
        %v1143 = vpop.f32.mrb[0].mxu0
        %v1144 = vadd.f32 %v920, %v1143
        %v1145 = vpop.f32.mrb[0].mxu0
        %1146 = vmatprep.mubr.bf16.mxu0 0
        %1147 = vmatmul.mubr.bf16.gmra.mrb[0].mxu0 %v885
        %v1148 = vpop.f32.mrb[0].mxu0
        %v1149 = vadd.f32 %v920, %v1148
        %v1150 = vpop.f32.mrb[0].mxu0
        %v1151 = vpop.f32.mrb[0].mxu0
        %v1152 = vadd.f32 %v920, %v1151
        %v1153 = vpop.f32.mrb[0].mxu0
        %1154 = vmatprep.mubr.bf16.mxu0 0
        %1155 = vmatmul.mubr.bf16.gmra.mrb[0].mxu0 %v886
        %v1156 = vpop.f32.mrb[0].mxu0
        %v1157 = vadd.f32 %v920, %v1156
        %v1158 = vpop.f32.mrb[0].mxu0
        %v1159 = vpop.f32.mrb[0].mxu0
        %v1160 = vadd.f32 %v920, %v1159
        %v1161 = vpop.f32.mrb[0].mxu0
        %1162 = vmatprep.mubr.bf16.mxu0 0
        %1163 = vmatmul.mubr.bf16.gmra.mrb[0].mxu0 %v887
        %v1164 = vpop.f32.mrb[0].mxu0
        %v1165 = vadd.f32 %v920, %v1164
        %v1166 = vpop.f32.mrb[0].mxu0
        %v1167 = vpop.f32.mrb[0].mxu0
        %v1168 = vadd.f32 %v920, %v1167
        %v1169 = vpop.f32.mrb[0].mxu0
        %1170 = vmatprep.mubr.bf16.mxu0 0
        %1171 = vmatmul.mubr.bf16.gmra.mrb[0].mxu0 %v888
        %v1172 = vpop.f32.mrb[0].mxu0
        %v1173 = vadd.f32 %v920, %v1172
        %v1174 = vpop.f32.mrb[0].mxu0
        %v1175 = vpop.f32.mrb[0].mxu0
        %v1176 = vadd.f32 %v920, %v1175
        %v1177 = vpop.f32.mrb[0].mxu0
        %1178 = vmatprep.mubr.bf16.mxu0 0
        %1179 = vmatmul.mubr.bf16.gmra.mrb[0].mxu0 %v889
        %v1180 = vpop.f32.mrb[0].mxu0
        %v1181 = vadd.f32 %v920, %v1180
        %v1182 = vpop.f32.mrb[0].mxu0
        %v1183 = vpop.f32.mrb[0].mxu0
        %v1184 = vadd.f32 %v920, %v1183
        %v1185 = vpop.f32.mrb[0].mxu0
        %1186 = vmatprep.mubr.bf16.mxu0 0
        %1187 = vmatmul.mubr.bf16.gmra.mrb[0].mxu0 %v890
        %v1188 = vpop.f32.mrb[0].mxu0
        %v1189 = vadd.f32 %v920, %v1188
        %v1190 = vpop.f32.mrb[0].mxu0
        %v1191 = vpop.f32.mrb[0].mxu0
        %v1192 = vadd.f32 %v920, %v1191
        %v1193 = vpop.f32.mrb[0].mxu0
        %1194 = vmatprep.mubr.bf16.mxu0 0
        %1195 = vmatmul.mubr.bf16.gmra.mrb[0].mxu0 %v891
        %v1196 = vpop.f32.mrb[0].mxu0
        %v1197 = vadd.f32 %v920, %v1196
        %v1198 = vpop.f32.mrb[0].mxu0
        %v1199 = vpop.f32.mrb[0].mxu0
        %v1200 = vadd.f32 %v920, %v1199
        %v1201 = vpop.f32.mrb[0].mxu0
        %1202 = vmatprep.mubr.bf16.mxu0 0
        %1203 = vmatmul.mubr.bf16.gmra.mrb[0].mxu0 %v892
        %v1204 = vpop.f32.mrb[0].mxu0
        %v1205 = vadd.f32 %v920, %v1204
        %v1206 = vpop.f32.mrb[0].mxu0
        %v1207 = vpop.f32.mrb[0].mxu0
        %v1208 = vadd.f32 %v920, %v1207
        %v1209 = vpop.f32.mrb[0].mxu0
        %1210 = vmatprep.mubr.bf16.mxu0 0
        %1211 = vmatmul.mubr.bf16.gmra.mrb[0].mxu0 %v893
        %v1212 = vpop.f32.mrb[0].mxu0
        %v1213 = vadd.f32 %v920, %v1212
        %v1214 = vpop.f32.mrb[0].mxu0
        %v1215 = vpop.f32.mrb[0].mxu0
        %v1216 = vadd.f32 %v920, %v1215
        %v1217 = vpop.f32.mrb[0].mxu0
        %1218 = vmatprep.mubr.bf16.mxu0 0
        %1219 = vmatmul.mubr.bf16.gmra.mrb[0].mxu0 %v894
        %v1220 = vpop.f32.mrb[0].mxu0
        %v1221 = vadd.f32 %v920, %v1220
        %v1222 = vpop.f32.mrb[0].mxu0
        %v1223 = vpop.f32.mrb[0].mxu0
        %v1224 = vadd.f32 %v920, %v1223
        %v1225 = vpop.f32.mrb[0].mxu0
        %1226 = vmatprep.mubr.bf16.mxu0 0
        %1227 = vmatmul.mubr.bf16.gmra.mrb[0].mxu0 %v895
        %v1228 = vpop.f32.mrb[0].mxu0
        %v1229 = vadd.f32 %v920, %v1228
        %v1230 = vpop.f32.mrb[0].mxu0
        %v1231 = vpop.f32.mrb[0].mxu0
        %v1232 = vadd.f32 %v920, %v1231
        %v1233 = vpop.f32.mrb[0].mxu0
        %1234 = vmatprep.mubr.bf16.mxu0 0
        %1235 = vmatmul.mubr.bf16.gmra.mrb[0].mxu0 %v896
        %v1236 = vpop.f32.mrb[0].mxu0
        %v1237 = vadd.f32 %v920, %v1236
        %v1238 = vpop.f32.mrb[0].mxu0
        %v1239 = vpop.f32.mrb[0].mxu0
        %v1240 = vadd.f32 %v920, %v1239
        %v1241 = vpop.f32.mrb[0].mxu0
        %1242 = vmatprep.mubr.bf16.mxu0 0
        %1243 = vmatmul.mubr.bf16.gmra.mrb[0].mxu0 %v897
        %v1244 = vpop.f32.mrb[0].mxu0
        %v1245 = vadd.f32 %v920, %v1244
        %v1246 = vpop.f32.mrb[0].mxu0
        %v1247 = vpop.f32.mrb[0].mxu0
        %v1248 = vadd.f32 %v920, %v1247
        %v1249 = vpop.f32.mrb[0].mxu0
        %1250 = vmatprep.mubr.bf16.mxu0 0
        %1251 = vmatmul.mubr.bf16.gmra.mrb[0].mxu0 %v898
        %v1252 = vpop.f32.mrb[0].mxu0
        %v1253 = vadd.f32 %v920, %v1252
        %v1254 = vpop.f32.mrb[0].mxu0
        %v1255 = vpop.f32.mrb[0].mxu0
        %v1256 = vpop.f32.mrb[0].mxu0
        %1257 = vdwg.mxu0
        %v1258 = vmax.f32 %v1005, 0.0
        %v1259 = vmax.f32 %v1008, 0.0
        %v1260 = vmax.f32 %v1013, 0.0
        %v1261 = vmax.f32 %v1016, 0.0
        %v1262 = vmax.f32 %v1021, 0.0
        %v1263 = vmax.f32 %v1024, 0.0
        %v1264 = vmax.f32 %v1029, 0.0
        %v1265 = vmax.f32 %v1032, 0.0
        %v1266 = vmax.f32 %v1037, 0.0
        %v1267 = vmax.f32 %v1040, 0.0
        %v1268 = vmax.f32 %v1045, 0.0
        %v1269 = vmax.f32 %v1048, 0.0
        %v1270 = vmax.f32 %v1053, 0.0
        %v1271 = vmax.f32 %v1056, 0.0
        %v1272 = vmax.f32 %v1061, 0.0
        %v1273 = vmax.f32 %v1064, 0.0
        %v1274 = vmax.f32 %v1069, 0.0
        %v1275 = vmax.f32 %v1072, 0.0
        %v1276 = vmax.f32 %v1077, 0.0
        %v1277 = vmax.f32 %v1080, 0.0
        %v1278 = vmax.f32 %v1085, 0.0
        %v1279 = vmax.f32 %v1088, 0.0
        %v1280 = vmax.f32 %v1093, 0.0
        %v1281 = vmax.f32 %v1096, 0.0
        %v1282 = vmax.f32 %v1101, 0.0
        %v1283 = vmax.f32 %v1104, 0.0
        %v1284 = vmax.f32 %v1109, 0.0
        %v1285 = vmax.f32 %v1112, 0.0
        %v1286 = vmax.f32 %v1117, 0.0
        %v1287 = vmax.f32 %v1120, 0.0
        %v1288 = vmax.f32 %v1125, 0.0
        %v1289 = vmax.f32 %v1128, 0.0
        %v1290 = vmax.f32 %v1133, 0.0
        %v1291 = vmax.f32 %v1136, 0.0
        %v1292 = vmax.f32 %v1141, 0.0
        %v1293 = vmax.f32 %v1144, 0.0
        %v1294 = vmax.f32 %v1149, 0.0
        %v1295 = vmax.f32 %v1152, 0.0
        %v1296 = vmax.f32 %v1157, 0.0
        %v1297 = vmax.f32 %v1160, 0.0
        %v1298 = vmax.f32 %v1165, 0.0
        %v1299 = vmax.f32 %v1168, 0.0
        %v1300 = vmax.f32 %v1173, 0.0
        %v1301 = vmax.f32 %v1176, 0.0
        %v1302 = vmax.f32 %v1181, 0.0
        %v1303 = vmax.f32 %v1184, 0.0
        %v1304 = vmax.f32 %v1189, 0.0
        %v1305 = vmax.f32 %v1192, 0.0
        %v1306 = vmax.f32 %v1197, 0.0
        %v1307 = vmax.f32 %v1200, 0.0
        %v1308 = vmax.f32 %v1205, 0.0
        %v1309 = vmax.f32 %v1208, 0.0
        %v1310 = vmax.f32 %v1213, 0.0
        %v1311 = vmax.f32 %v1216, 0.0
        %v1312 = vmax.f32 %v1221, 0.0
        %v1313 = vmax.f32 %v1224, 0.0
        %v1314 = vmax.f32 %v1229, 0.0
        %v1315 = vmax.f32 %v1232, 0.0
        %v1316 = vmax.f32 %v1237, 0.0
        %v1317 = vmax.f32 %v1240, 0.0
        %v1318 = vmax.f32 %v1245, 0.0
        %v1319 = vmax.f32 %v1248, 0.0
        %v1320 = vmax.f32 %v1253, 0.0
        %vm1321 = vcmask 523264
        %v1322 = vsel %vm1321, %v1258, 0.0
        %1323 = vadd.xlane.f32.xlu0 %v1322
        %v1324 = vpop.xlane.xlu0 %1323
        %v1325 = vsel %vm1321, %v1259, 0.0
        %1326 = vadd.xlane.f32.xlu0 %v1325
        %v1327 = vpop.xlane.xlu0 %1326
        %v1328 = vsel %vm1321, %v1260, 0.0
        %1329 = vadd.xlane.f32.xlu0 %v1328
        %v1330 = vpop.xlane.xlu0 %1329
        %v1331 = vsel %vm1321, %v1261, 0.0
        %1332 = vadd.xlane.f32.xlu0 %v1331
        %v1333 = vpop.xlane.xlu0 %1332
        %v1334 = vsel %vm1321, %v1262, 0.0
        %1335 = vadd.xlane.f32.xlu0 %v1334
        %v1336 = vpop.xlane.xlu0 %1335
        %v1337 = vsel %vm1321, %v1263, 0.0
        %1338 = vadd.xlane.f32.xlu0 %v1337
        %v1339 = vpop.xlane.xlu0 %1338
        %v1340 = vsel %vm1321, %v1264, 0.0
        %1341 = vadd.xlane.f32.xlu0 %v1340
        %v1342 = vpop.xlane.xlu0 %1341
        %v1343 = vsel %vm1321, %v1265, 0.0
        %1344 = vadd.xlane.f32.xlu0 %v1343
        %v1345 = vpop.xlane.xlu0 %1344
        %v1346 = vsel %vm1321, %v1266, 0.0
        %1347 = vadd.xlane.f32.xlu0 %v1346
        %v1348 = vpop.xlane.xlu0 %1347
        %v1349 = vsel %vm1321, %v1267, 0.0
        %1350 = vadd.xlane.f32.xlu0 %v1349
        %v1351 = vpop.xlane.xlu0 %1350
        %v1352 = vsel %vm1321, %v1268, 0.0
        %1353 = vadd.xlane.f32.xlu0 %v1352
        %v1354 = vpop.xlane.xlu0 %1353
        %v1355 = vsel %vm1321, %v1269, 0.0
        %1356 = vadd.xlane.f32.xlu0 %v1355
        %v1357 = vpop.xlane.xlu0 %1356
        %v1358 = vsel %vm1321, %v1270, 0.0
        %1359 = vadd.xlane.f32.xlu0 %v1358
        %v1360 = vpop.xlane.xlu0 %1359
        %v1361 = vsel %vm1321, %v1271, 0.0
        %1362 = vadd.xlane.f32.xlu0 %v1361
        %v1363 = vpop.xlane.xlu0 %1362
        %v1364 = vsel %vm1321, %v1272, 0.0
        %1365 = vadd.xlane.f32.xlu0 %v1364
        %v1366 = vpop.xlane.xlu0 %1365
        %v1367 = vsel %vm1321, %v1273, 0.0
        %1368 = vadd.xlane.f32.xlu0 %v1367
        %v1369 = vpop.xlane.xlu0 %1368
        %v1370 = vsel %vm1321, %v1274, 0.0
        %1371 = vadd.xlane.f32.xlu0 %v1370
        %v1372 = vpop.xlane.xlu0 %1371
        %v1373 = vsel %vm1321, %v1275, 0.0
        %1374 = vadd.xlane.f32.xlu0 %v1373
        %v1375 = vpop.xlane.xlu0 %1374
        %v1376 = vsel %vm1321, %v1276, 0.0
        %1377 = vadd.xlane.f32.xlu0 %v1376
        %v1378 = vpop.xlane.xlu0 %1377
        %v1379 = vsel %vm1321, %v1277, 0.0
        %1380 = vadd.xlane.f32.xlu0 %v1379
        %v1381 = vpop.xlane.xlu0 %1380
        %v1382 = vsel %vm1321, %v1278, 0.0
        %1383 = vadd.xlane.f32.xlu0 %v1382
        %v1384 = vpop.xlane.xlu0 %1383
        %v1385 = vsel %vm1321, %v1279, 0.0
        %1386 = vadd.xlane.f32.xlu0 %v1385
        %v1387 = vpop.xlane.xlu0 %1386
        %v1388 = vsel %vm1321, %v1280, 0.0
        %1389 = vadd.xlane.f32.xlu0 %v1388
        %v1390 = vpop.xlane.xlu0 %1389
        %v1391 = vsel %vm1321, %v1281, 0.0
        %1392 = vadd.xlane.f32.xlu0 %v1391
        %v1393 = vpop.xlane.xlu0 %1392
        %v1394 = vsel %vm1321, %v1282, 0.0
        %1395 = vadd.xlane.f32.xlu0 %v1394
        %v1396 = vpop.xlane.xlu0 %1395
        %v1397 = vsel %vm1321, %v1283, 0.0
        %1398 = vadd.xlane.f32.xlu0 %v1397
        %v1399 = vpop.xlane.xlu0 %1398
        %v1400 = vsel %vm1321, %v1284, 0.0
        %1401 = vadd.xlane.f32.xlu0 %v1400
        %v1402 = vpop.xlane.xlu0 %1401
        %v1403 = vsel %vm1321, %v1285, 0.0
        %1404 = vadd.xlane.f32.xlu0 %v1403
        %v1405 = vpop.xlane.xlu0 %1404
        %v1406 = vsel %vm1321, %v1286, 0.0
        %1407 = vadd.xlane.f32.xlu0 %v1406
        %v1408 = vpop.xlane.xlu0 %1407
        %v1409 = vsel %vm1321, %v1287, 0.0
        %1410 = vadd.xlane.f32.xlu0 %v1409
        %v1411 = vpop.xlane.xlu0 %1410
        %v1412 = vsel %vm1321, %v1288, 0.0
        %1413 = vadd.xlane.f32.xlu0 %v1412
        %v1414 = vpop.xlane.xlu0 %1413
        %v1415 = vsel %vm1321, %v1289, 0.0
        %1416 = vadd.xlane.f32.xlu0 %v1415
        %v1417 = vpop.xlane.xlu0 %1416
        %v1418 = vsel %vm1321, %v1290, 0.0
        %1419 = vadd.xlane.f32.xlu0 %v1418
        %v1420 = vpop.xlane.xlu0 %1419
        %v1421 = vsel %vm1321, %v1291, 0.0
        %1422 = vadd.xlane.f32.xlu0 %v1421
        %v1423 = vpop.xlane.xlu0 %1422
        %v1424 = vsel %vm1321, %v1292, 0.0
        %1425 = vadd.xlane.f32.xlu0 %v1424
        %v1426 = vpop.xlane.xlu0 %1425
        %v1427 = vsel %vm1321, %v1293, 0.0
        %1428 = vadd.xlane.f32.xlu0 %v1427
        %v1429 = vpop.xlane.xlu0 %1428
        %v1430 = vsel %vm1321, %v1294, 0.0
        %1431 = vadd.xlane.f32.xlu0 %v1430
        %v1432 = vpop.xlane.xlu0 %1431
        %v1433 = vsel %vm1321, %v1295, 0.0
        %1434 = vadd.xlane.f32.xlu0 %v1433
        %v1435 = vpop.xlane.xlu0 %1434
        %v1436 = vsel %vm1321, %v1296, 0.0
        %1437 = vadd.xlane.f32.xlu0 %v1436
        %v1438 = vpop.xlane.xlu0 %1437
        %v1439 = vsel %vm1321, %v1297, 0.0
        %1440 = vadd.xlane.f32.xlu0 %v1439
        %v1441 = vpop.xlane.xlu0 %1440
        %v1442 = vsel %vm1321, %v1298, 0.0
        %1443 = vadd.xlane.f32.xlu0 %v1442
        %v1444 = vpop.xlane.xlu0 %1443
        %v1445 = vsel %vm1321, %v1299, 0.0
        %1446 = vadd.xlane.f32.xlu0 %v1445
        %v1447 = vpop.xlane.xlu0 %1446
        %v1448 = vsel %vm1321, %v1300, 0.0
        %1449 = vadd.xlane.f32.xlu0 %v1448
        %v1450 = vpop.xlane.xlu0 %1449
        %v1451 = vsel %vm1321, %v1301, 0.0
        %1452 = vadd.xlane.f32.xlu0 %v1451
        %v1453 = vpop.xlane.xlu0 %1452
        %v1454 = vsel %vm1321, %v1302, 0.0
        %1455 = vadd.xlane.f32.xlu0 %v1454
        %v1456 = vpop.xlane.xlu0 %1455
        %v1457 = vsel %vm1321, %v1303, 0.0
        %1458 = vadd.xlane.f32.xlu0 %v1457
        %v1459 = vpop.xlane.xlu0 %1458
        %v1460 = vsel %vm1321, %v1304, 0.0
        %1461 = vadd.xlane.f32.xlu0 %v1460
        %v1462 = vpop.xlane.xlu0 %1461
        %v1463 = vsel %vm1321, %v1305, 0.0
        %1464 = vadd.xlane.f32.xlu0 %v1463
        %v1465 = vpop.xlane.xlu0 %1464
        %v1466 = vsel %vm1321, %v1306, 0.0
        %1467 = vadd.xlane.f32.xlu0 %v1466
        %v1468 = vpop.xlane.xlu0 %1467
        %v1469 = vsel %vm1321, %v1307, 0.0
        %1470 = vadd.xlane.f32.xlu0 %v1469
        %v1471 = vpop.xlane.xlu0 %1470
        %v1472 = vsel %vm1321, %v1308, 0.0
        %1473 = vadd.xlane.f32.xlu0 %v1472
        %v1474 = vpop.xlane.xlu0 %1473
        %v1475 = vsel %vm1321, %v1309, 0.0
        %1476 = vadd.xlane.f32.xlu0 %v1475
        %v1477 = vpop.xlane.xlu0 %1476
        %v1478 = vsel %vm1321, %v1310, 0.0
        %1479 = vadd.xlane.f32.xlu0 %v1478
        %v1480 = vpop.xlane.xlu0 %1479
        %v1481 = vsel %vm1321, %v1311, 0.0
        %1482 = vadd.xlane.f32.xlu0 %v1481
        %v1483 = vpop.xlane.xlu0 %1482
        %v1484 = vsel %vm1321, %v1312, 0.0
        %1485 = vadd.xlane.f32.xlu0 %v1484
        %v1486 = vpop.xlane.xlu0 %1485
        %v1487 = vsel %vm1321, %v1313, 0.0
        %1488 = vadd.xlane.f32.xlu0 %v1487
        %v1489 = vpop.xlane.xlu0 %1488
        %v1490 = vsel %vm1321, %v1314, 0.0
        %1491 = vadd.xlane.f32.xlu0 %v1490
        %v1492 = vpop.xlane.xlu0 %1491
        %v1493 = vsel %vm1321, %v1315, 0.0
        %1494 = vadd.xlane.f32.xlu0 %v1493
        %v1495 = vpop.xlane.xlu0 %1494
        %v1496 = vsel %vm1321, %v1316, 0.0
        %1497 = vadd.xlane.f32.xlu0 %v1496
        %v1498 = vpop.xlane.xlu0 %1497
        %v1499 = vsel %vm1321, %v1317, 0.0
        %1500 = vadd.xlane.f32.xlu0 %v1499
        %v1501 = vpop.xlane.xlu0 %1500
        %v1502 = vsel %vm1321, %v1318, 0.0
        %1503 = vadd.xlane.f32.xlu0 %v1502
        %v1504 = vpop.xlane.xlu0 %1503
        %v1505 = vsel %vm1321, %v1319, 0.0
        %1506 = vadd.xlane.f32.xlu0 %v1505
        %v1507 = vpop.xlane.xlu0 %1506
        %v1508 = vsel %vm1321, %v1320, 0.0
        %1509 = vadd.xlane.f32.xlu0 %v1508
        %v1510 = vpop.xlane.xlu0 %1509
        %v1511 = vmul.f32 %v1324, 0.015625
        %v1512 = vmul.f32 %v1327, 0.015625
        %v1513 = vmul.f32 %v1330, 0.015625
        %v1514 = vmul.f32 %v1333, 0.015625
        %v1515 = vmul.f32 %v1336, 0.015625
        %v1516 = vmul.f32 %v1339, 0.015625
        %v1517 = vmul.f32 %v1342, 0.015625
        %v1518 = vmul.f32 %v1345, 0.015625
        %v1519 = vmul.f32 %v1348, 0.015625
        %v1520 = vmul.f32 %v1351, 0.015625
        %v1521 = vmul.f32 %v1354, 0.015625
        %v1522 = vmul.f32 %v1357, 0.015625
        %v1523 = vmul.f32 %v1360, 0.015625
        %v1524 = vmul.f32 %v1363, 0.015625
        %v1525 = vmul.f32 %v1366, 0.015625
        %v1526 = vmul.f32 %v1369, 0.015625
        %v1527 = vmul.f32 %v1372, 0.015625
        %v1528 = vmul.f32 %v1375, 0.015625
        %v1529 = vmul.f32 %v1378, 0.015625
        %v1530 = vmul.f32 %v1381, 0.015625
        %v1531 = vmul.f32 %v1384, 0.015625
        %v1532 = vmul.f32 %v1387, 0.015625
        %v1533 = vmul.f32 %v1390, 0.015625
        %v1534 = vmul.f32 %v1393, 0.015625
        %v1535 = vmul.f32 %v1396, 0.015625
        %v1536 = vmul.f32 %v1399, 0.015625
        %v1537 = vmul.f32 %v1402, 0.015625
        %v1538 = vmul.f32 %v1405, 0.015625
        %v1539 = vmul.f32 %v1408, 0.015625
        %v1540 = vmul.f32 %v1411, 0.015625
        %v1541 = vmul.f32 %v1414, 0.015625
        %v1542 = vmul.f32 %v1417, 0.015625
        %v1543 = vmul.f32 %v1420, 0.015625
        %v1544 = vmul.f32 %v1423, 0.015625
        %v1545 = vmul.f32 %v1426, 0.015625
        %v1546 = vmul.f32 %v1429, 0.015625
        %v1547 = vmul.f32 %v1432, 0.015625
        %v1548 = vmul.f32 %v1435, 0.015625
        %v1549 = vmul.f32 %v1438, 0.015625
        %v1550 = vmul.f32 %v1441, 0.015625
        %v1551 = vmul.f32 %v1444, 0.015625
        %v1552 = vmul.f32 %v1447, 0.015625
        %v1553 = vmul.f32 %v1450, 0.015625
        %v1554 = vmul.f32 %v1453, 0.015625
        %v1555 = vmul.f32 %v1456, 0.015625
        %v1556 = vmul.f32 %v1459, 0.015625
        %v1557 = vmul.f32 %v1462, 0.015625
        %v1558 = vmul.f32 %v1465, 0.015625
        %v1559 = vmul.f32 %v1468, 0.015625
        %v1560 = vmul.f32 %v1471, 0.015625
        %v1561 = vmul.f32 %v1474, 0.015625
        %v1562 = vmul.f32 %v1477, 0.015625
        %v1563 = vmul.f32 %v1480, 0.015625
        %v1564 = vmul.f32 %v1483, 0.015625
        %v1565 = vmul.f32 %v1486, 0.015625
        %v1566 = vmul.f32 %v1489, 0.015625
        %v1567 = vmul.f32 %v1492, 0.015625
        %v1568 = vmul.f32 %v1495, 0.015625
        %v1569 = vmul.f32 %v1498, 0.015625
        %v1570 = vmul.f32 %v1501, 0.015625
        %v1571 = vmul.f32 %v1504, 0.015625
        %v1572 = vmul.f32 %v1507, 0.015625
        %v1573 = vmul.f32 %v1510, 0.015625
        %v1574 = vsub.f32 %v1258, %v1511
        %v1575 = vsub.f32 %v1259, %v1512
        %v1576 = vsub.f32 %v1260, %v1513
        %v1577 = vsub.f32 %v1261, %v1514
        %v1578 = vsub.f32 %v1262, %v1515
        %v1579 = vsub.f32 %v1263, %v1516
        %v1580 = vsub.f32 %v1264, %v1517
        %v1581 = vsub.f32 %v1265, %v1518
        %v1582 = vsub.f32 %v1266, %v1519
        %v1583 = vsub.f32 %v1267, %v1520
        %v1584 = vsub.f32 %v1268, %v1521
        %v1585 = vsub.f32 %v1269, %v1522
        %v1586 = vsub.f32 %v1270, %v1523
        %v1587 = vsub.f32 %v1271, %v1524
        %v1588 = vsub.f32 %v1272, %v1525
        %v1589 = vsub.f32 %v1273, %v1526
        %v1590 = vsub.f32 %v1274, %v1527
        %v1591 = vsub.f32 %v1275, %v1528
        %v1592 = vsub.f32 %v1276, %v1529
        %v1593 = vsub.f32 %v1277, %v1530
        %v1594 = vsub.f32 %v1278, %v1531
        %v1595 = vsub.f32 %v1279, %v1532
        %v1596 = vsub.f32 %v1280, %v1533
        %v1597 = vsub.f32 %v1281, %v1534
        %v1598 = vsub.f32 %v1282, %v1535
        %v1599 = vsub.f32 %v1283, %v1536
        %v1600 = vsub.f32 %v1284, %v1537
        %v1601 = vsub.f32 %v1285, %v1538
        %v1602 = vsub.f32 %v1286, %v1539
        %v1603 = vsub.f32 %v1287, %v1540
        %v1604 = vsub.f32 %v1288, %v1541
        %v1605 = vsub.f32 %v1289, %v1542
        %v1606 = vsub.f32 %v1290, %v1543
        %v1607 = vsub.f32 %v1291, %v1544
        %v1608 = vsub.f32 %v1292, %v1545
        %v1609 = vsub.f32 %v1293, %v1546
        %v1610 = vsub.f32 %v1294, %v1547
        %v1611 = vsub.f32 %v1295, %v1548
        %v1612 = vsub.f32 %v1296, %v1549
        %v1613 = vsub.f32 %v1297, %v1550
        %v1614 = vsub.f32 %v1298, %v1551
        %v1615 = vsub.f32 %v1299, %v1552
        %v1616 = vsub.f32 %v1300, %v1553
        %v1617 = vsub.f32 %v1301, %v1554
        %v1618 = vsub.f32 %v1302, %v1555
        %v1619 = vsub.f32 %v1303, %v1556
        %v1620 = vsub.f32 %v1304, %v1557
        %v1621 = vsub.f32 %v1305, %v1558
        %v1622 = vsub.f32 %v1306, %v1559
        %v1623 = vsub.f32 %v1307, %v1560
        %v1624 = vsub.f32 %v1308, %v1561
        %v1625 = vsub.f32 %v1309, %v1562
        %v1626 = vsub.f32 %v1310, %v1563
        %v1627 = vsub.f32 %v1311, %v1564
        %v1628 = vsub.f32 %v1312, %v1565
        %v1629 = vsub.f32 %v1313, %v1566
        %v1630 = vsub.f32 %v1314, %v1567
        %v1631 = vsub.f32 %v1315, %v1568
        %v1632 = vsub.f32 %v1316, %v1569
        %v1633 = vsub.f32 %v1317, %v1570
        %v1634 = vsub.f32 %v1318, %v1571
        %v1635 = vsub.f32 %v1319, %v1572
        %v1636 = vsub.f32 %v1320, %v1573
        %v1637 = vmul.f32 %v1574, %v1574
        %v1638 = vmul.f32 %v1575, %v1575
        %v1639 = vmul.f32 %v1576, %v1576
        %v1640 = vmul.f32 %v1577, %v1577
        %v1641 = vmul.f32 %v1578, %v1578
        %v1642 = vmul.f32 %v1579, %v1579
        %v1643 = vmul.f32 %v1580, %v1580
        %v1644 = vmul.f32 %v1581, %v1581
        %v1645 = vmul.f32 %v1582, %v1582
        %v1646 = vmul.f32 %v1583, %v1583
        %v1647 = vmul.f32 %v1584, %v1584
        %v1648 = vmul.f32 %v1585, %v1585
        %v1649 = vmul.f32 %v1586, %v1586
        %v1650 = vmul.f32 %v1587, %v1587
        %v1651 = vmul.f32 %v1588, %v1588
        %v1652 = vmul.f32 %v1589, %v1589
        %v1653 = vmul.f32 %v1590, %v1590
        %v1654 = vmul.f32 %v1591, %v1591
        %v1655 = vmul.f32 %v1592, %v1592
        %v1656 = vmul.f32 %v1593, %v1593
        %v1657 = vmul.f32 %v1594, %v1594
        %v1658 = vmul.f32 %v1595, %v1595
        %v1659 = vmul.f32 %v1596, %v1596
        %v1660 = vmul.f32 %v1597, %v1597
        %v1661 = vmul.f32 %v1598, %v1598
        %v1662 = vmul.f32 %v1599, %v1599
        %v1663 = vmul.f32 %v1600, %v1600
        %v1664 = vmul.f32 %v1601, %v1601
        %v1665 = vmul.f32 %v1602, %v1602
        %v1666 = vmul.f32 %v1603, %v1603
        %v1667 = vmul.f32 %v1604, %v1604
        %v1668 = vmul.f32 %v1605, %v1605
        %v1669 = vmul.f32 %v1606, %v1606
        %v1670 = vmul.f32 %v1607, %v1607
        %v1671 = vmul.f32 %v1608, %v1608
        %v1672 = vmul.f32 %v1609, %v1609
        %v1673 = vmul.f32 %v1610, %v1610
        %v1674 = vmul.f32 %v1611, %v1611
        %v1675 = vmul.f32 %v1612, %v1612
        %v1676 = vmul.f32 %v1613, %v1613
        %v1677 = vmul.f32 %v1614, %v1614
        %v1678 = vmul.f32 %v1615, %v1615
        %v1679 = vmul.f32 %v1616, %v1616
        %v1680 = vmul.f32 %v1617, %v1617
        %v1681 = vmul.f32 %v1618, %v1618
        %v1682 = vmul.f32 %v1619, %v1619
        %v1683 = vmul.f32 %v1620, %v1620
        %v1684 = vmul.f32 %v1621, %v1621
        %v1685 = vmul.f32 %v1622, %v1622
        %v1686 = vmul.f32 %v1623, %v1623
        %v1687 = vmul.f32 %v1624, %v1624
        %v1688 = vmul.f32 %v1625, %v1625
        %v1689 = vmul.f32 %v1626, %v1626
        %v1690 = vmul.f32 %v1627, %v1627
        %v1691 = vmul.f32 %v1628, %v1628
        %v1692 = vmul.f32 %v1629, %v1629
        %v1693 = vmul.f32 %v1630, %v1630
        %v1694 = vmul.f32 %v1631, %v1631
        %v1695 = vmul.f32 %v1632, %v1632
        %v1696 = vmul.f32 %v1633, %v1633
        %v1697 = vmul.f32 %v1634, %v1634
        %v1698 = vmul.f32 %v1635, %v1635
        %v1699 = vmul.f32 %v1636, %v1636
        %v1700 = vsel %vm1321, %v1637, 0.0
        %1701 = vadd.xlane.f32.xlu0 %v1700
        %v1702 = vpop.xlane.xlu0 %1701
        %v1703 = vsel %vm1321, %v1638, 0.0
        %1704 = vadd.xlane.f32.xlu0 %v1703
        %v1705 = vpop.xlane.xlu0 %1704
        %v1706 = vsel %vm1321, %v1639, 0.0
        %1707 = vadd.xlane.f32.xlu0 %v1706
        %v1708 = vpop.xlane.xlu0 %1707
        %v1709 = vsel %vm1321, %v1640, 0.0
        %1710 = vadd.xlane.f32.xlu0 %v1709
        %v1711 = vpop.xlane.xlu0 %1710
        %v1712 = vsel %vm1321, %v1641, 0.0
        %1713 = vadd.xlane.f32.xlu0 %v1712
        %v1714 = vpop.xlane.xlu0 %1713
        %v1715 = vsel %vm1321, %v1642, 0.0
        %1716 = vadd.xlane.f32.xlu0 %v1715
        %v1717 = vpop.xlane.xlu0 %1716
        %v1718 = vsel %vm1321, %v1643, 0.0
        %1719 = vadd.xlane.f32.xlu0 %v1718
        %v1720 = vpop.xlane.xlu0 %1719
        %v1721 = vsel %vm1321, %v1644, 0.0
        %1722 = vadd.xlane.f32.xlu0 %v1721
        %v1723 = vpop.xlane.xlu0 %1722
        %v1724 = vsel %vm1321, %v1645, 0.0
        %1725 = vadd.xlane.f32.xlu0 %v1724
        %v1726 = vpop.xlane.xlu0 %1725
        %v1727 = vsel %vm1321, %v1646, 0.0
        %1728 = vadd.xlane.f32.xlu0 %v1727
        %v1729 = vpop.xlane.xlu0 %1728
        %v1730 = vsel %vm1321, %v1647, 0.0
        %1731 = vadd.xlane.f32.xlu0 %v1730
        %v1732 = vpop.xlane.xlu0 %1731
        %v1733 = vsel %vm1321, %v1648, 0.0
        %1734 = vadd.xlane.f32.xlu0 %v1733
        %v1735 = vpop.xlane.xlu0 %1734
        %v1736 = vsel %vm1321, %v1649, 0.0
        %1737 = vadd.xlane.f32.xlu0 %v1736
        %v1738 = vpop.xlane.xlu0 %1737
        %v1739 = vsel %vm1321, %v1650, 0.0
        %1740 = vadd.xlane.f32.xlu0 %v1739
        %v1741 = vpop.xlane.xlu0 %1740
        %v1742 = vsel %vm1321, %v1651, 0.0
        %1743 = vadd.xlane.f32.xlu0 %v1742
        %v1744 = vpop.xlane.xlu0 %1743
        %v1745 = vsel %vm1321, %v1652, 0.0
        %1746 = vadd.xlane.f32.xlu0 %v1745
        %v1747 = vpop.xlane.xlu0 %1746
        %v1748 = vsel %vm1321, %v1653, 0.0
        %1749 = vadd.xlane.f32.xlu0 %v1748
        %v1750 = vpop.xlane.xlu0 %1749
        %v1751 = vsel %vm1321, %v1654, 0.0
        %1752 = vadd.xlane.f32.xlu0 %v1751
        %v1753 = vpop.xlane.xlu0 %1752
        %v1754 = vsel %vm1321, %v1655, 0.0
        %1755 = vadd.xlane.f32.xlu0 %v1754
        %v1756 = vpop.xlane.xlu0 %1755
        %v1757 = vsel %vm1321, %v1656, 0.0
        %1758 = vadd.xlane.f32.xlu0 %v1757
        %v1759 = vpop.xlane.xlu0 %1758
        %v1760 = vsel %vm1321, %v1657, 0.0
        %1761 = vadd.xlane.f32.xlu0 %v1760
        %v1762 = vpop.xlane.xlu0 %1761
        %v1763 = vsel %vm1321, %v1658, 0.0
        %1764 = vadd.xlane.f32.xlu0 %v1763
        %v1765 = vpop.xlane.xlu0 %1764
        %v1766 = vsel %vm1321, %v1659, 0.0
        %1767 = vadd.xlane.f32.xlu0 %v1766
        %v1768 = vpop.xlane.xlu0 %1767
        %v1769 = vsel %vm1321, %v1660, 0.0
        %1770 = vadd.xlane.f32.xlu0 %v1769
        %v1771 = vpop.xlane.xlu0 %1770
        %v1772 = vsel %vm1321, %v1661, 0.0
        %1773 = vadd.xlane.f32.xlu0 %v1772
        %v1774 = vpop.xlane.xlu0 %1773
        %v1775 = vsel %vm1321, %v1662, 0.0
        %1776 = vadd.xlane.f32.xlu0 %v1775
        %v1777 = vpop.xlane.xlu0 %1776
        %v1778 = vsel %vm1321, %v1663, 0.0
        %1779 = vadd.xlane.f32.xlu0 %v1778
        %v1780 = vpop.xlane.xlu0 %1779
        %v1781 = vsel %vm1321, %v1664, 0.0
        %1782 = vadd.xlane.f32.xlu0 %v1781
        %v1783 = vpop.xlane.xlu0 %1782
        %v1784 = vsel %vm1321, %v1665, 0.0
        %1785 = vadd.xlane.f32.xlu0 %v1784
        %v1786 = vpop.xlane.xlu0 %1785
        %v1787 = vsel %vm1321, %v1666, 0.0
        %1788 = vadd.xlane.f32.xlu0 %v1787
        %v1789 = vpop.xlane.xlu0 %1788
        %v1790 = vsel %vm1321, %v1667, 0.0
        %1791 = vadd.xlane.f32.xlu0 %v1790
        %v1792 = vpop.xlane.xlu0 %1791
        %v1793 = vsel %vm1321, %v1668, 0.0
        %1794 = vadd.xlane.f32.xlu0 %v1793
        %v1795 = vpop.xlane.xlu0 %1794
        %v1796 = vsel %vm1321, %v1669, 0.0
        %1797 = vadd.xlane.f32.xlu0 %v1796
        %v1798 = vpop.xlane.xlu0 %1797
        %v1799 = vsel %vm1321, %v1670, 0.0
        %1800 = vadd.xlane.f32.xlu0 %v1799
        %v1801 = vpop.xlane.xlu0 %1800
        %v1802 = vsel %vm1321, %v1671, 0.0
        %1803 = vadd.xlane.f32.xlu0 %v1802
        %v1804 = vpop.xlane.xlu0 %1803
        %v1805 = vsel %vm1321, %v1672, 0.0
        %1806 = vadd.xlane.f32.xlu0 %v1805
        %v1807 = vpop.xlane.xlu0 %1806
        %v1808 = vsel %vm1321, %v1673, 0.0
        %1809 = vadd.xlane.f32.xlu0 %v1808
        %v1810 = vpop.xlane.xlu0 %1809
        %v1811 = vsel %vm1321, %v1674, 0.0
        %1812 = vadd.xlane.f32.xlu0 %v1811
        %v1813 = vpop.xlane.xlu0 %1812
        %v1814 = vsel %vm1321, %v1675, 0.0
        %1815 = vadd.xlane.f32.xlu0 %v1814
        %v1816 = vpop.xlane.xlu0 %1815
        %v1817 = vsel %vm1321, %v1676, 0.0
        %1818 = vadd.xlane.f32.xlu0 %v1817
        %v1819 = vpop.xlane.xlu0 %1818
        %v1820 = vsel %vm1321, %v1677, 0.0
        %1821 = vadd.xlane.f32.xlu0 %v1820
        %v1822 = vpop.xlane.xlu0 %1821
        %v1823 = vsel %vm1321, %v1678, 0.0
        %1824 = vadd.xlane.f32.xlu0 %v1823
        %v1825 = vpop.xlane.xlu0 %1824
        %v1826 = vsel %vm1321, %v1679, 0.0
        %1827 = vadd.xlane.f32.xlu0 %v1826
        %v1828 = vpop.xlane.xlu0 %1827
        %v1829 = vsel %vm1321, %v1680, 0.0
        %1830 = vadd.xlane.f32.xlu0 %v1829
        %v1831 = vpop.xlane.xlu0 %1830
        %v1832 = vsel %vm1321, %v1681, 0.0
        %1833 = vadd.xlane.f32.xlu0 %v1832
        %v1834 = vpop.xlane.xlu0 %1833
        %v1835 = vsel %vm1321, %v1682, 0.0
        %1836 = vadd.xlane.f32.xlu0 %v1835
        %v1837 = vpop.xlane.xlu0 %1836
        %v1838 = vsel %vm1321, %v1683, 0.0
        %1839 = vadd.xlane.f32.xlu0 %v1838
        %v1840 = vpop.xlane.xlu0 %1839
        %v1841 = vsel %vm1321, %v1684, 0.0
        %1842 = vadd.xlane.f32.xlu0 %v1841
        %v1843 = vpop.xlane.xlu0 %1842
        %v1844 = vsel %vm1321, %v1685, 0.0
        %1845 = vadd.xlane.f32.xlu0 %v1844
        %v1846 = vpop.xlane.xlu0 %1845
        %v1847 = vsel %vm1321, %v1686, 0.0
        %1848 = vadd.xlane.f32.xlu0 %v1847
        %v1849 = vpop.xlane.xlu0 %1848
        %v1850 = vsel %vm1321, %v1687, 0.0
        %1851 = vadd.xlane.f32.xlu0 %v1850
        %v1852 = vpop.xlane.xlu0 %1851
        %v1853 = vsel %vm1321, %v1688, 0.0
        %1854 = vadd.xlane.f32.xlu0 %v1853
        %v1855 = vpop.xlane.xlu0 %1854
        %v1856 = vsel %vm1321, %v1689, 0.0
        %1857 = vadd.xlane.f32.xlu0 %v1856
        %v1858 = vpop.xlane.xlu0 %1857
        %v1859 = vsel %vm1321, %v1690, 0.0
        %1860 = vadd.xlane.f32.xlu0 %v1859
        %v1861 = vpop.xlane.xlu0 %1860
        %v1862 = vsel %vm1321, %v1691, 0.0
        %1863 = vadd.xlane.f32.xlu0 %v1862
        %v1864 = vpop.xlane.xlu0 %1863
        %v1865 = vsel %vm1321, %v1692, 0.0
        %1866 = vadd.xlane.f32.xlu0 %v1865
        %v1867 = vpop.xlane.xlu0 %1866
        %v1868 = vsel %vm1321, %v1693, 0.0
        %1869 = vadd.xlane.f32.xlu0 %v1868
        %v1870 = vpop.xlane.xlu0 %1869
        %v1871 = vsel %vm1321, %v1694, 0.0
        %1872 = vadd.xlane.f32.xlu0 %v1871
        %v1873 = vpop.xlane.xlu0 %1872
        %v1874 = vsel %vm1321, %v1695, 0.0
        %1875 = vadd.xlane.f32.xlu0 %v1874
        %v1876 = vpop.xlane.xlu0 %1875
        %v1877 = vsel %vm1321, %v1696, 0.0
        %1878 = vadd.xlane.f32.xlu0 %v1877
        %v1879 = vpop.xlane.xlu0 %1878
        %v1880 = vsel %vm1321, %v1697, 0.0
        %1881 = vadd.xlane.f32.xlu0 %v1880
        %v1882 = vpop.xlane.xlu0 %1881
        %v1883 = vsel %vm1321, %v1698, 0.0
        %1884 = vadd.xlane.f32.xlu0 %v1883
        %v1885 = vpop.xlane.xlu0 %1884
        %v1886 = vsel %vm1321, %v1699, 0.0
        %1887 = vadd.xlane.f32.xlu0 %v1886
        %v1888 = vpop.xlane.xlu0 %1887
        %v1889 = vmul.f32 %v1702, 0.015625
        %v1890 = vmul.f32 %v1705, 0.015625
        %v1891 = vmul.f32 %v1708, 0.015625
        %v1892 = vmul.f32 %v1711, 0.015625
        %v1893 = vmul.f32 %v1714, 0.015625
        %v1894 = vmul.f32 %v1717, 0.015625
        %v1895 = vmul.f32 %v1720, 0.015625
        %v1896 = vmul.f32 %v1723, 0.015625
        %v1897 = vmul.f32 %v1726, 0.015625
        %v1898 = vmul.f32 %v1729, 0.015625
        %v1899 = vmul.f32 %v1732, 0.015625
        %v1900 = vmul.f32 %v1735, 0.015625
        %v1901 = vmul.f32 %v1738, 0.015625
        %v1902 = vmul.f32 %v1741, 0.015625
        %v1903 = vmul.f32 %v1744, 0.015625
        %v1904 = vmul.f32 %v1747, 0.015625
        %v1905 = vmul.f32 %v1750, 0.015625
        %v1906 = vmul.f32 %v1753, 0.015625
        %v1907 = vmul.f32 %v1756, 0.015625
        %v1908 = vmul.f32 %v1759, 0.015625
        %v1909 = vmul.f32 %v1762, 0.015625
        %v1910 = vmul.f32 %v1765, 0.015625
        %v1911 = vmul.f32 %v1768, 0.015625
        %v1912 = vmul.f32 %v1771, 0.015625
        %v1913 = vmul.f32 %v1774, 0.015625
        %v1914 = vmul.f32 %v1777, 0.015625
        %v1915 = vmul.f32 %v1780, 0.015625
        %v1916 = vmul.f32 %v1783, 0.015625
        %v1917 = vmul.f32 %v1786, 0.015625
        %v1918 = vmul.f32 %v1789, 0.015625
        %v1919 = vmul.f32 %v1792, 0.015625
        %v1920 = vmul.f32 %v1795, 0.015625
        %v1921 = vmul.f32 %v1798, 0.015625
        %v1922 = vmul.f32 %v1801, 0.015625
        %v1923 = vmul.f32 %v1804, 0.015625
        %v1924 = vmul.f32 %v1807, 0.015625
        %v1925 = vmul.f32 %v1810, 0.015625
        %v1926 = vmul.f32 %v1813, 0.015625
        %v1927 = vmul.f32 %v1816, 0.015625
        %v1928 = vmul.f32 %v1819, 0.015625
        %v1929 = vmul.f32 %v1822, 0.015625
        %v1930 = vmul.f32 %v1825, 0.015625
        %v1931 = vmul.f32 %v1828, 0.015625
        %v1932 = vmul.f32 %v1831, 0.015625
        %v1933 = vmul.f32 %v1834, 0.015625
        %v1934 = vmul.f32 %v1837, 0.015625
        %v1935 = vmul.f32 %v1840, 0.015625
        %v1936 = vmul.f32 %v1843, 0.015625
        %v1937 = vmul.f32 %v1846, 0.015625
        %v1938 = vmul.f32 %v1849, 0.015625
        %v1939 = vmul.f32 %v1852, 0.015625
        %v1940 = vmul.f32 %v1855, 0.015625
        %v1941 = vmul.f32 %v1858, 0.015625
        %v1942 = vmul.f32 %v1861, 0.015625
        %v1943 = vmul.f32 %v1864, 0.015625
        %v1944 = vmul.f32 %v1867, 0.015625
        %v1945 = vmul.f32 %v1870, 0.015625
        %v1946 = vmul.f32 %v1873, 0.015625
        %v1947 = vmul.f32 %v1876, 0.015625
        %v1948 = vmul.f32 %v1879, 0.015625
        %v1949 = vmul.f32 %v1882, 0.015625
        %v1950 = vmul.f32 %v1885, 0.015625
        %v1951 = vmul.f32 %v1888, 0.015625
        %v1952 = vadd.f32 %v1889, 1e-05
        %v1953 = vadd.f32 %v1890, 1e-05
        %v1954 = vadd.f32 %v1891, 1e-05
        %v1955 = vadd.f32 %v1892, 1e-05
        %v1956 = vadd.f32 %v1893, 1e-05
        %v1957 = vadd.f32 %v1894, 1e-05
        %v1958 = vadd.f32 %v1895, 1e-05
        %v1959 = vadd.f32 %v1896, 1e-05
        %v1960 = vadd.f32 %v1897, 1e-05
        %v1961 = vadd.f32 %v1898, 1e-05
        %v1962 = vadd.f32 %v1899, 1e-05
        %v1963 = vadd.f32 %v1900, 1e-05
        %v1964 = vadd.f32 %v1901, 1e-05
        %v1965 = vadd.f32 %v1902, 1e-05
        %v1966 = vadd.f32 %v1903, 1e-05
        %v1967 = vadd.f32 %v1904, 1e-05
        %v1968 = vadd.f32 %v1905, 1e-05
        %v1969 = vadd.f32 %v1906, 1e-05
        %v1970 = vadd.f32 %v1907, 1e-05
        %v1971 = vadd.f32 %v1908, 1e-05
        %v1972 = vadd.f32 %v1909, 1e-05
        %v1973 = vadd.f32 %v1910, 1e-05
        %v1974 = vadd.f32 %v1911, 1e-05
        %v1975 = vadd.f32 %v1912, 1e-05
        %v1976 = vadd.f32 %v1913, 1e-05
        %v1977 = vadd.f32 %v1914, 1e-05
        %v1978 = vadd.f32 %v1915, 1e-05
        %v1979 = vadd.f32 %v1916, 1e-05
        %v1980 = vadd.f32 %v1917, 1e-05
        %v1981 = vadd.f32 %v1918, 1e-05
        %v1982 = vadd.f32 %v1919, 1e-05
        %v1983 = vadd.f32 %v1920, 1e-05
        %v1984 = vadd.f32 %v1921, 1e-05
        %v1985 = vadd.f32 %v1922, 1e-05
        %v1986 = vadd.f32 %v1923, 1e-05
        %v1987 = vadd.f32 %v1924, 1e-05
        %v1988 = vadd.f32 %v1925, 1e-05
        %v1989 = vadd.f32 %v1926, 1e-05
        %v1990 = vadd.f32 %v1927, 1e-05
        %v1991 = vadd.f32 %v1928, 1e-05
        %v1992 = vadd.f32 %v1929, 1e-05
        %v1993 = vadd.f32 %v1930, 1e-05
        %v1994 = vadd.f32 %v1931, 1e-05
        %v1995 = vadd.f32 %v1932, 1e-05
        %v1996 = vadd.f32 %v1933, 1e-05
        %v1997 = vadd.f32 %v1934, 1e-05
        %v1998 = vadd.f32 %v1935, 1e-05
        %v1999 = vadd.f32 %v1936, 1e-05
        %v2000 = vadd.f32 %v1937, 1e-05
        %v2001 = vadd.f32 %v1938, 1e-05
        %v2002 = vadd.f32 %v1939, 1e-05
        %v2003 = vadd.f32 %v1940, 1e-05
        %v2004 = vadd.f32 %v1941, 1e-05
        %v2005 = vadd.f32 %v1942, 1e-05
        %v2006 = vadd.f32 %v1943, 1e-05
        %v2007 = vadd.f32 %v1944, 1e-05
        %v2008 = vadd.f32 %v1945, 1e-05
        %v2009 = vadd.f32 %v1946, 1e-05
        %v2010 = vadd.f32 %v1947, 1e-05
        %v2011 = vadd.f32 %v1948, 1e-05
        %v2012 = vadd.f32 %v1949, 1e-05
        %v2013 = vadd.f32 %v1950, 1e-05
        %v2014 = vadd.f32 %v1951, 1e-05
        %v2015 = vrsqrt.pop %v1952
        %v2016 = vrsqrt.pop %v1953
        %v2017 = vrsqrt.pop %v1954
        %v2018 = vrsqrt.pop %v1955
        %v2019 = vrsqrt.pop %v1956
        %v2020 = vrsqrt.pop %v1957
        %v2021 = vrsqrt.pop %v1958
        %v2022 = vrsqrt.pop %v1959
        %v2023 = vrsqrt.pop %v1960
        %v2024 = vrsqrt.pop %v1961
        %v2025 = vrsqrt.pop %v1962
        %v2026 = vrsqrt.pop %v1963
        %v2027 = vrsqrt.pop %v1964
        %v2028 = vrsqrt.pop %v1965
        %v2029 = vrsqrt.pop %v1966
        %v2030 = vrsqrt.pop %v1967
        %v2031 = vrsqrt.pop %v1968
        %v2032 = vrsqrt.pop %v1969
        %v2033 = vrsqrt.pop %v1970
        %v2034 = vrsqrt.pop %v1971
        %v2035 = vrsqrt.pop %v1972
        %v2036 = vrsqrt.pop %v1973
        %v2037 = vrsqrt.pop %v1974
        %v2038 = vrsqrt.pop %v1975
        %v2039 = vrsqrt.pop %v1976
        %v2040 = vrsqrt.pop %v1977
        %v2041 = vrsqrt.pop %v1978
        %v2042 = vrsqrt.pop %v1979
        %v2043 = vrsqrt.pop %v1980
        %v2044 = vrsqrt.pop %v1981
        %v2045 = vrsqrt.pop %v1982
        %v2046 = vrsqrt.pop %v1983
        %v2047 = vrsqrt.pop %v1984
        %v2048 = vrsqrt.pop %v1985
        %v2049 = vrsqrt.pop %v1986
        %v2050 = vrsqrt.pop %v1987
        %v2051 = vrsqrt.pop %v1988
        %v2052 = vrsqrt.pop %v1989
        %v2053 = vrsqrt.pop %v1990
        %v2054 = vrsqrt.pop %v1991
        %v2055 = vrsqrt.pop %v1992
        %v2056 = vrsqrt.pop %v1993
        %v2057 = vrsqrt.pop %v1994
        %v2058 = vrsqrt.pop %v1995
        %v2059 = vrsqrt.pop %v1996
        %v2060 = vrsqrt.pop %v1997
        %v2061 = vrsqrt.pop %v1998
        %v2062 = vrsqrt.pop %v1999
        %v2063 = vrsqrt.pop %v2000
        %v2064 = vrsqrt.pop %v2001
        %v2065 = vrsqrt.pop %v2002
        %v2066 = vrsqrt.pop %v2003
        %v2067 = vrsqrt.pop %v2004
        %v2068 = vrsqrt.pop %v2005
        %v2069 = vrsqrt.pop %v2006
        %v2070 = vrsqrt.pop %v2007
        %v2071 = vrsqrt.pop %v2008
        %v2072 = vrsqrt.pop %v2009
        %v2073 = vrsqrt.pop %v2010
        %v2074 = vrsqrt.pop %v2011
        %v2075 = vrsqrt.pop %v2012
        %v2076 = vrsqrt.pop %v2013
        %v2077 = vrsqrt.pop %v2014
        %v2078 = vmul.f32 %v1574, %v2015
        %v2079 = vmul.f32 %v1575, %v2016
        %v2080 = vmul.f32 %v1576, %v2017
        %v2081 = vmul.f32 %v1577, %v2018
        %v2082 = vmul.f32 %v1578, %v2019
        %v2083 = vmul.f32 %v1579, %v2020
        %v2084 = vmul.f32 %v1580, %v2021
        %v2085 = vmul.f32 %v1581, %v2022
        %v2086 = vmul.f32 %v1582, %v2023
        %v2087 = vmul.f32 %v1583, %v2024
        %v2088 = vmul.f32 %v1584, %v2025
        %v2089 = vmul.f32 %v1585, %v2026
        %v2090 = vmul.f32 %v1586, %v2027
        %v2091 = vmul.f32 %v1587, %v2028
        %v2092 = vmul.f32 %v1588, %v2029
        %v2093 = vmul.f32 %v1589, %v2030
        %v2094 = vmul.f32 %v1590, %v2031
        %v2095 = vmul.f32 %v1591, %v2032
        %v2096 = vmul.f32 %v1592, %v2033
        %v2097 = vmul.f32 %v1593, %v2034
        %v2098 = vmul.f32 %v1594, %v2035
        %v2099 = vmul.f32 %v1595, %v2036
        %v2100 = vmul.f32 %v1596, %v2037
        %v2101 = vmul.f32 %v1597, %v2038
        %v2102 = vmul.f32 %v1598, %v2039
        %v2103 = vmul.f32 %v1599, %v2040
        %v2104 = vmul.f32 %v1600, %v2041
        %v2105 = vmul.f32 %v1601, %v2042
        %v2106 = vmul.f32 %v1602, %v2043
        %v2107 = vmul.f32 %v1603, %v2044
        %v2108 = vmul.f32 %v1604, %v2045
        %v2109 = vmul.f32 %v1605, %v2046
        %v2110 = vmul.f32 %v1606, %v2047
        %v2111 = vmul.f32 %v1607, %v2048
        %v2112 = vmul.f32 %v1608, %v2049
        %v2113 = vmul.f32 %v1609, %v2050
        %v2114 = vmul.f32 %v1610, %v2051
        %v2115 = vmul.f32 %v1611, %v2052
        %v2116 = vmul.f32 %v1612, %v2053
        %v2117 = vmul.f32 %v1613, %v2054
        %v2118 = vmul.f32 %v1614, %v2055
        %v2119 = vmul.f32 %v1615, %v2056
        %v2120 = vmul.f32 %v1616, %v2057
        %v2121 = vmul.f32 %v1617, %v2058
        %v2122 = vmul.f32 %v1618, %v2059
        %v2123 = vmul.f32 %v1619, %v2060
        %v2124 = vmul.f32 %v1620, %v2061
        %v2125 = vmul.f32 %v1621, %v2062
        %v2126 = vmul.f32 %v1622, %v2063
        %v2127 = vmul.f32 %v1623, %v2064
        %v2128 = vmul.f32 %v1624, %v2065
        %v2129 = vmul.f32 %v1625, %v2066
        %v2130 = vmul.f32 %v1626, %v2067
        %v2131 = vmul.f32 %v1627, %v2068
        %v2132 = vmul.f32 %v1628, %v2069
        %v2133 = vmul.f32 %v1629, %v2070
        %v2134 = vmul.f32 %v1630, %v2071
        %v2135 = vmul.f32 %v1631, %v2072
        %v2136 = vmul.f32 %v1632, %v2073
        %v2137 = vmul.f32 %v1633, %v2074
        %v2138 = vmul.f32 %v1634, %v2075
        %v2139 = vmul.f32 %v1635, %v2076
        %v2140 = vmul.f32 %v1636, %v2077
        %v2141 = vld [vmem:[%s5] sm:$0x1]
        %v2143 = vlaneseq
        %v2144 = vshrl.u32 %v2143, 7
        %v2145 = vsub.s32 0, %v2144
        %v2146 = vrot.slane %v2141, %v2145
        %v2148 = vmul.f32 %v2078, %v2146
        %v2149 = vmul.f32 %v2079, %v2146
        %v2150 = vmul.f32 %v2080, %v2146
        %v2151 = vmul.f32 %v2081, %v2146
        %v2152 = vmul.f32 %v2082, %v2146
        %v2153 = vmul.f32 %v2083, %v2146
        %v2154 = vmul.f32 %v2084, %v2146
        %v2155 = vmul.f32 %v2085, %v2146
        %v2156 = vmul.f32 %v2086, %v2146
        %v2157 = vmul.f32 %v2087, %v2146
        %v2158 = vmul.f32 %v2088, %v2146
        %v2159 = vmul.f32 %v2089, %v2146
        %v2160 = vmul.f32 %v2090, %v2146
        %v2161 = vmul.f32 %v2091, %v2146
        %v2162 = vmul.f32 %v2092, %v2146
        %v2163 = vmul.f32 %v2093, %v2146
        %v2164 = vmul.f32 %v2094, %v2146
        %v2165 = vmul.f32 %v2095, %v2146
        %v2166 = vmul.f32 %v2096, %v2146
        %v2167 = vmul.f32 %v2097, %v2146
        %v2168 = vmul.f32 %v2098, %v2146
        %v2169 = vmul.f32 %v2099, %v2146
        %v2170 = vmul.f32 %v2100, %v2146
        %v2171 = vmul.f32 %v2101, %v2146
        %v2172 = vmul.f32 %v2102, %v2146
        %v2173 = vmul.f32 %v2103, %v2146
        %v2174 = vmul.f32 %v2104, %v2146
        %v2175 = vmul.f32 %v2105, %v2146
        %v2176 = vmul.f32 %v2106, %v2146
        %v2177 = vmul.f32 %v2107, %v2146
        %v2178 = vmul.f32 %v2108, %v2146
        %v2179 = vmul.f32 %v2109, %v2146
        %v2180 = vmul.f32 %v2110, %v2146
        %v2181 = vmul.f32 %v2111, %v2146
        %v2182 = vmul.f32 %v2112, %v2146
        %v2183 = vmul.f32 %v2113, %v2146
        %v2184 = vmul.f32 %v2114, %v2146
        %v2185 = vmul.f32 %v2115, %v2146
        %v2186 = vmul.f32 %v2116, %v2146
        %v2187 = vmul.f32 %v2117, %v2146
        %v2188 = vmul.f32 %v2118, %v2146
        %v2189 = vmul.f32 %v2119, %v2146
        %v2190 = vmul.f32 %v2120, %v2146
        %v2191 = vmul.f32 %v2121, %v2146
        %v2192 = vmul.f32 %v2122, %v2146
        %v2193 = vmul.f32 %v2123, %v2146
        %v2194 = vmul.f32 %v2124, %v2146
        %v2195 = vmul.f32 %v2125, %v2146
        %v2196 = vmul.f32 %v2126, %v2146
        %v2197 = vmul.f32 %v2127, %v2146
        %v2198 = vmul.f32 %v2128, %v2146
        %v2199 = vmul.f32 %v2129, %v2146
        %v2200 = vmul.f32 %v2130, %v2146
        %v2201 = vmul.f32 %v2131, %v2146
        %v2202 = vmul.f32 %v2132, %v2146
        %v2203 = vmul.f32 %v2133, %v2146
        %v2204 = vmul.f32 %v2134, %v2146
        %v2205 = vmul.f32 %v2135, %v2146
        %v2206 = vmul.f32 %v2136, %v2146
        %v2207 = vmul.f32 %v2137, %v2146
        %v2208 = vmul.f32 %v2138, %v2146
        %v2209 = vmul.f32 %v2139, %v2146
        %v2210 = vmul.f32 %v2140, %v2146
        %v2211 = vld [vmem:[%s6] sm:$0x1]
        %v2213 = vlaneseq
        %v2214 = vshrl.u32 %v2213, 7
        %v2215 = vsub.s32 0, %v2214
        %v2216 = vrot.slane %v2211, %v2215
        %v2218 = vadd.f32 %v2148, %v2216
        %v2219 = vadd.f32 %v2149, %v2216
        %v2220 = vadd.f32 %v2150, %v2216
        %v2221 = vadd.f32 %v2151, %v2216
        %v2222 = vadd.f32 %v2152, %v2216
        %v2223 = vadd.f32 %v2153, %v2216
        %v2224 = vadd.f32 %v2154, %v2216
        %v2225 = vadd.f32 %v2155, %v2216
        %v2226 = vadd.f32 %v2156, %v2216
        %v2227 = vadd.f32 %v2157, %v2216
        %v2228 = vadd.f32 %v2158, %v2216
        %v2229 = vadd.f32 %v2159, %v2216
        %v2230 = vadd.f32 %v2160, %v2216
        %v2231 = vadd.f32 %v2161, %v2216
        %v2232 = vadd.f32 %v2162, %v2216
        %v2233 = vadd.f32 %v2163, %v2216
        %v2234 = vadd.f32 %v2164, %v2216
        %v2235 = vadd.f32 %v2165, %v2216
        %v2236 = vadd.f32 %v2166, %v2216
        %v2237 = vadd.f32 %v2167, %v2216
        %v2238 = vadd.f32 %v2168, %v2216
        %v2239 = vadd.f32 %v2169, %v2216
        %v2240 = vadd.f32 %v2170, %v2216
        %v2241 = vadd.f32 %v2171, %v2216
        %v2242 = vadd.f32 %v2172, %v2216
        %v2243 = vadd.f32 %v2173, %v2216
        %v2244 = vadd.f32 %v2174, %v2216
        %v2245 = vadd.f32 %v2175, %v2216
        %v2246 = vadd.f32 %v2176, %v2216
        %v2247 = vadd.f32 %v2177, %v2216
        %v2248 = vadd.f32 %v2178, %v2216
        %v2249 = vadd.f32 %v2179, %v2216
        %v2250 = vadd.f32 %v2180, %v2216
        %v2251 = vadd.f32 %v2181, %v2216
        %v2252 = vadd.f32 %v2182, %v2216
        %v2253 = vadd.f32 %v2183, %v2216
        %v2254 = vadd.f32 %v2184, %v2216
        %v2255 = vadd.f32 %v2185, %v2216
        %v2256 = vadd.f32 %v2186, %v2216
        %v2257 = vadd.f32 %v2187, %v2216
        %v2258 = vadd.f32 %v2188, %v2216
        %v2259 = vadd.f32 %v2189, %v2216
        %v2260 = vadd.f32 %v2190, %v2216
        %v2261 = vadd.f32 %v2191, %v2216
        %v2262 = vadd.f32 %v2192, %v2216
        %v2263 = vadd.f32 %v2193, %v2216
        %v2264 = vadd.f32 %v2194, %v2216
        %v2265 = vadd.f32 %v2195, %v2216
        %v2266 = vadd.f32 %v2196, %v2216
        %v2267 = vadd.f32 %v2197, %v2216
        %v2268 = vadd.f32 %v2198, %v2216
        %v2269 = vadd.f32 %v2199, %v2216
        %v2270 = vadd.f32 %v2200, %v2216
        %v2271 = vadd.f32 %v2201, %v2216
        %v2272 = vadd.f32 %v2202, %v2216
        %v2273 = vadd.f32 %v2203, %v2216
        %v2274 = vadd.f32 %v2204, %v2216
        %v2275 = vadd.f32 %v2205, %v2216
        %v2276 = vadd.f32 %v2206, %v2216
        %v2277 = vadd.f32 %v2207, %v2216
        %v2278 = vadd.f32 %v2208, %v2216
        %v2279 = vadd.f32 %v2209, %v2216
        %v2280 = vadd.f32 %v2210, %v2216
        %2281 = vst.msk [vmem:[%s280] sm:$0xff] %vm1321, %v2218
        %2282 = vst.msk [vmem:[%s280 + $0x8] sm:$0xff] %vm1321, %v2219
        %2283 = vst.msk [vmem:[%s280 + $0x10] sm:$0xff] %vm1321, %v2220
        %2284 = vst.msk [vmem:[%s280 + $0x18] sm:$0xff] %vm1321, %v2221
        %2285 = vst.msk [vmem:[%s280 + $0x20] sm:$0xff] %vm1321, %v2222
        %2286 = vst.msk [vmem:[%s280 + $0x28] sm:$0xff] %vm1321, %v2223
        %2287 = vst.msk [vmem:[%s280 + $0x30] sm:$0xff] %vm1321, %v2224
        %2288 = vst.msk [vmem:[%s280 + $0x38] sm:$0xff] %vm1321, %v2225
        %2289 = vst.msk [vmem:[%s280 + $0x40] sm:$0xff] %vm1321, %v2226
        %2290 = vst.msk [vmem:[%s280 + $0x48] sm:$0xff] %vm1321, %v2227
        %2291 = vst.msk [vmem:[%s280 + $0x50] sm:$0xff] %vm1321, %v2228
        %2292 = vst.msk [vmem:[%s280 + $0x58] sm:$0xff] %vm1321, %v2229
        %2293 = vst.msk [vmem:[%s280 + $0x60] sm:$0xff] %vm1321, %v2230
        %2294 = vst.msk [vmem:[%s280 + $0x68] sm:$0xff] %vm1321, %v2231
        %2295 = vst.msk [vmem:[%s280 + $0x70] sm:$0xff] %vm1321, %v2232
        %2296 = vst.msk [vmem:[%s280 + $0x78] sm:$0xff] %vm1321, %v2233
        %2297 = vst.msk [vmem:[%s280 + $0x80] sm:$0xff] %vm1321, %v2234
        %2298 = vst.msk [vmem:[%s280 + $0x88] sm:$0xff] %vm1321, %v2235
        %2299 = vst.msk [vmem:[%s280 + $0x90] sm:$0xff] %vm1321, %v2236
        %2300 = vst.msk [vmem:[%s280 + $0x98] sm:$0xff] %vm1321, %v2237
        %2301 = vst.msk [vmem:[%s280 + $0xa0] sm:$0xff] %vm1321, %v2238
        %2302 = vst.msk [vmem:[%s280 + $0xa8] sm:$0xff] %vm1321, %v2239
        %2303 = vst.msk [vmem:[%s280 + $0xb0] sm:$0xff] %vm1321, %v2240
        %2304 = vst.msk [vmem:[%s280 + $0xb8] sm:$0xff] %vm1321, %v2241
        %2305 = vst.msk [vmem:[%s280 + $0xc0] sm:$0xff] %vm1321, %v2242
        %2306 = vst.msk [vmem:[%s280 + $0xc8] sm:$0xff] %vm1321, %v2243
        %2307 = vst.msk [vmem:[%s280 + $0xd0] sm:$0xff] %vm1321, %v2244
        %2308 = vst.msk [vmem:[%s280 + $0xd8] sm:$0xff] %vm1321, %v2245
        %2309 = vst.msk [vmem:[%s280 + $0xe0] sm:$0xff] %vm1321, %v2246
        %2310 = vst.msk [vmem:[%s280 + $0xe8] sm:$0xff] %vm1321, %v2247
        %2311 = vst.msk [vmem:[%s280 + $0xf0] sm:$0xff] %vm1321, %v2248
        %2312 = vst.msk [vmem:[%s280 + $0xf8] sm:$0xff] %vm1321, %v2249
        %2313 = vst.msk [vmem:[%s280 + $0x100] sm:$0xff] %vm1321, %v2250
        %2314 = vst.msk [vmem:[%s280 + $0x108] sm:$0xff] %vm1321, %v2251
        %2315 = vst.msk [vmem:[%s280 + $0x110] sm:$0xff] %vm1321, %v2252
        %2316 = vst.msk [vmem:[%s280 + $0x118] sm:$0xff] %vm1321, %v2253
        %2317 = vst.msk [vmem:[%s280 + $0x120] sm:$0xff] %vm1321, %v2254
        %2318 = vst.msk [vmem:[%s280 + $0x128] sm:$0xff] %vm1321, %v2255
        %2319 = vst.msk [vmem:[%s280 + $0x130] sm:$0xff] %vm1321, %v2256
        %2320 = vst.msk [vmem:[%s280 + $0x138] sm:$0xff] %vm1321, %v2257
        %2321 = vst.msk [vmem:[%s280 + $0x140] sm:$0xff] %vm1321, %v2258
        %2322 = vst.msk [vmem:[%s280 + $0x148] sm:$0xff] %vm1321, %v2259
        %2323 = vst.msk [vmem:[%s280 + $0x150] sm:$0xff] %vm1321, %v2260
        %2324 = vst.msk [vmem:[%s280 + $0x158] sm:$0xff] %vm1321, %v2261
        %2325 = vst.msk [vmem:[%s280 + $0x160] sm:$0xff] %vm1321, %v2262
        %2326 = vst.msk [vmem:[%s280 + $0x168] sm:$0xff] %vm1321, %v2263
        %2327 = vst.msk [vmem:[%s280 + $0x170] sm:$0xff] %vm1321, %v2264
        %2328 = vst.msk [vmem:[%s280 + $0x178] sm:$0xff] %vm1321, %v2265
        %2329 = vst.msk [vmem:[%s280 + $0x180] sm:$0xff] %vm1321, %v2266
        %2330 = vst.msk [vmem:[%s280 + $0x188] sm:$0xff] %vm1321, %v2267
        %2331 = vst.msk [vmem:[%s280 + $0x190] sm:$0xff] %vm1321, %v2268
        %2332 = vst.msk [vmem:[%s280 + $0x198] sm:$0xff] %vm1321, %v2269
        %2333 = vst.msk [vmem:[%s280 + $0x1a0] sm:$0xff] %vm1321, %v2270
        %2334 = vst.msk [vmem:[%s280 + $0x1a8] sm:$0xff] %vm1321, %v2271
        %2335 = vst.msk [vmem:[%s280 + $0x1b0] sm:$0xff] %vm1321, %v2272
        %2336 = vst.msk [vmem:[%s280 + $0x1b8] sm:$0xff] %vm1321, %v2273
        %2337 = vst.msk [vmem:[%s280 + $0x1c0] sm:$0xff] %vm1321, %v2274
        %2338 = vst.msk [vmem:[%s280 + $0x1c8] sm:$0xff] %vm1321, %v2275
        %2339 = vst.msk [vmem:[%s280 + $0x1d0] sm:$0xff] %vm1321, %v2276
        %2340 = vst.msk [vmem:[%s280 + $0x1d8] sm:$0xff] %vm1321, %v2277
        %2341 = vst.msk [vmem:[%s280 + $0x1e0] sm:$0xff] %vm1321, %v2278
        %2342 = vst.msk [vmem:[%s280 + $0x1e8] sm:$0xff] %vm1321, %v2279
        %2343 = vst.msk [vmem:[%s280 + $0x1f0] sm:$0xff] %vm1321, %v2280
        %s2344 = sand.u32 %s178, 1
        %s2345 = sand.u32 %s178, 1
        %s2346 = smul.addr %s2345, 504
        %s2347 = scalar_lea.vmem [#allocation2], %s2346
        // Predicated region
        $region49: #{tpu_custom_call.1} parent=47 // pred_check
          %p2348 = pneg %p188
        $region50: #{tpu_custom_call.1} parent=47 // pred_check_branch
          %2350 = sbr.rel (%p2348) target = $region52
        $region51: #{tpu_custom_call.1} parent=47 // pred_region
          %s2351 = smul.u32 63, %s18
          %s2352 = ssub.s32 125, %s2351
          %p2353 = scmp.lt.s32.totalorder %s2352, 63
          %s2354 = scalar_select %p2353, %s2352, 63
          %s2355 = smul.u32 128, %s2354
          %p2356 = scmp.ne.s32.totalorder 0, %s2355
          %s2357 = smul.addr %s2351, 8
          %s2358 = scalar_lea.vmem %s7, %s2357
          // Predicated region
          $region53: #{tpu_custom_call.1} parent=51 // pred_check
            %p2359 = pneg %p2356
          $region54: #{tpu_custom_call.1} parent=51 // pred_check_branch
            %2361 = sbr.rel (%p2359) target = $region56
          $region55: #{tpu_custom_call.1} parent=51 // pred_region
            // Predicated region
            $region57: #{tpu_custom_call.1} parent=55 // pred_check
              _
            $region58: #{tpu_custom_call.1} parent=55 // pred_check_branch
              %2363 = sbr.rel (0) target = $region60
            $region59: #{tpu_custom_call.1} parent=55 // pred_region
              // Predicated region
              $region79: #{tpu_custom_call.1} parent=59 // pred_check
                _
              $region80: #{tpu_custom_call.1} parent=59 // pred_check_branch
                %2537 = sbr.rel (0) target = $region82
              $region81: #{tpu_custom_call.1} parent=59 // pred_region
                %s2538 = sdiv.u32.pop %s2354, 63
                %s2539 = srem.u32.pop %s2354, 63
                // While loop
                $region83: #{tpu_custom_call.1} parent=81 // loop_pre_header
                  _
                $region84: #{tpu_custom_call.1} parent=81 // loop_header
                  %s2541 = sphi 0, %s2543
                  %p2542 = scmp.ge.s32.totalorder %s2541, %s2538
                  %s2546 = sphi 0, %s2677
                  %s2547 = sphi %s2347, %s2680
                  %s2548 = sphi %s2358, %s2681
                $region85: #{tpu_custom_call.1} parent=81 // loop_header_branch
                  %2545 = sbr.rel (%p2542) target = $region89
                $region86: #{tpu_custom_call.1} parent=81 // loop_body
                  %v2549 = vld [vmem:[%s2547] sm:$0xff]
                  %2550 = vst [vmem:[%s2548] sm:$0xff] %v2549
                  %v2551 = vld [vmem:[%s2547 + $0x8] sm:$0xff]
                  %2552 = vst [vmem:[%s2548 + $0x8] sm:$0xff] %v2551
                  %v2553 = vld [vmem:[%s2547 + $0x10] sm:$0xff]
                  %2554 = vst [vmem:[%s2548 + $0x10] sm:$0xff] %v2553
                  %v2555 = vld [vmem:[%s2547 + $0x18] sm:$0xff]
                  %2556 = vst [vmem:[%s2548 + $0x18] sm:$0xff] %v2555
                  %v2557 = vld [vmem:[%s2547 + $0x20] sm:$0xff]
                  %2558 = vst [vmem:[%s2548 + $0x20] sm:$0xff] %v2557
                  %v2559 = vld [vmem:[%s2547 + $0x28] sm:$0xff]
                  %2560 = vst [vmem:[%s2548 + $0x28] sm:$0xff] %v2559
                  %v2561 = vld [vmem:[%s2547 + $0x30] sm:$0xff]
                  %2562 = vst [vmem:[%s2548 + $0x30] sm:$0xff] %v2561
                  %v2563 = vld [vmem:[%s2547 + $0x38] sm:$0xff]
                  %2564 = vst [vmem:[%s2548 + $0x38] sm:$0xff] %v2563
                  %v2565 = vld [vmem:[%s2547 + $0x40] sm:$0xff]
                  %2566 = vst [vmem:[%s2548 + $0x40] sm:$0xff] %v2565
                  %v2567 = vld [vmem:[%s2547 + $0x48] sm:$0xff]
                  %2568 = vst [vmem:[%s2548 + $0x48] sm:$0xff] %v2567
                  %v2569 = vld [vmem:[%s2547 + $0x50] sm:$0xff]
                  %2570 = vst [vmem:[%s2548 + $0x50] sm:$0xff] %v2569
                  %v2571 = vld [vmem:[%s2547 + $0x58] sm:$0xff]
                  %2572 = vst [vmem:[%s2548 + $0x58] sm:$0xff] %v2571
                  %v2573 = vld [vmem:[%s2547 + $0x60] sm:$0xff]
                  %2574 = vst [vmem:[%s2548 + $0x60] sm:$0xff] %v2573
                  %v2575 = vld [vmem:[%s2547 + $0x68] sm:$0xff]
                  %2576 = vst [vmem:[%s2548 + $0x68] sm:$0xff] %v2575
                  %v2577 = vld [vmem:[%s2547 + $0x70] sm:$0xff]
                  %2578 = vst [vmem:[%s2548 + $0x70] sm:$0xff] %v2577
                  %v2579 = vld [vmem:[%s2547 + $0x78] sm:$0xff]
                  %2580 = vst [vmem:[%s2548 + $0x78] sm:$0xff] %v2579
                  %v2581 = vld [vmem:[%s2547 + $0x80] sm:$0xff]
                  %2582 = vst [vmem:[%s2548 + $0x80] sm:$0xff] %v2581
                  %v2583 = vld [vmem:[%s2547 + $0x88] sm:$0xff]
                  %2584 = vst [vmem:[%s2548 + $0x88] sm:$0xff] %v2583
                  %v2585 = vld [vmem:[%s2547 + $0x90] sm:$0xff]
                  %2586 = vst [vmem:[%s2548 + $0x90] sm:$0xff] %v2585
                  %v2587 = vld [vmem:[%s2547 + $0x98] sm:$0xff]
                  %2588 = vst [vmem:[%s2548 + $0x98] sm:$0xff] %v2587
                  %v2589 = vld [vmem:[%s2547 + $0xa0] sm:$0xff]
                  %2590 = vst [vmem:[%s2548 + $0xa0] sm:$0xff] %v2589
                  %v2591 = vld [vmem:[%s2547 + $0xa8] sm:$0xff]
                  %2592 = vst [vmem:[%s2548 + $0xa8] sm:$0xff] %v2591
                  %v2593 = vld [vmem:[%s2547 + $0xb0] sm:$0xff]
                  %2594 = vst [vmem:[%s2548 + $0xb0] sm:$0xff] %v2593
                  %v2595 = vld [vmem:[%s2547 + $0xb8] sm:$0xff]
                  %2596 = vst [vmem:[%s2548 + $0xb8] sm:$0xff] %v2595
                  %v2597 = vld [vmem:[%s2547 + $0xc0] sm:$0xff]
                  %2598 = vst [vmem:[%s2548 + $0xc0] sm:$0xff] %v2597
                  %v2599 = vld [vmem:[%s2547 + $0xc8] sm:$0xff]
                  %2600 = vst [vmem:[%s2548 + $0xc8] sm:$0xff] %v2599
                  %v2601 = vld [vmem:[%s2547 + $0xd0] sm:$0xff]
                  %2602 = vst [vmem:[%s2548 + $0xd0] sm:$0xff] %v2601
                  %v2603 = vld [vmem:[%s2547 + $0xd8] sm:$0xff]
                  %2604 = vst [vmem:[%s2548 + $0xd8] sm:$0xff] %v2603
                  %v2605 = vld [vmem:[%s2547 + $0xe0] sm:$0xff]
                  %2606 = vst [vmem:[%s2548 + $0xe0] sm:$0xff] %v2605
                  %v2607 = vld [vmem:[%s2547 + $0xe8] sm:$0xff]
                  %2608 = vst [vmem:[%s2548 + $0xe8] sm:$0xff] %v2607
                  %v2609 = vld [vmem:[%s2547 + $0xf0] sm:$0xff]
                  %2610 = vst [vmem:[%s2548 + $0xf0] sm:$0xff] %v2609
                  %v2611 = vld [vmem:[%s2547 + $0xf8] sm:$0xff]
                  %2612 = vst [vmem:[%s2548 + $0xf8] sm:$0xff] %v2611
                  %v2613 = vld [vmem:[%s2547 + $0x100] sm:$0xff]
                  %2614 = vst [vmem:[%s2548 + $0x100] sm:$0xff] %v2613
                  %v2615 = vld [vmem:[%s2547 + $0x108] sm:$0xff]
                  %2616 = vst [vmem:[%s2548 + $0x108] sm:$0xff] %v2615
                  %v2617 = vld [vmem:[%s2547 + $0x110] sm:$0xff]
                  %2618 = vst [vmem:[%s2548 + $0x110] sm:$0xff] %v2617
                  %v2619 = vld [vmem:[%s2547 + $0x118] sm:$0xff]
                  %2620 = vst [vmem:[%s2548 + $0x118] sm:$0xff] %v2619
                  %v2621 = vld [vmem:[%s2547 + $0x120] sm:$0xff]
                  %2622 = vst [vmem:[%s2548 + $0x120] sm:$0xff] %v2621
                  %v2623 = vld [vmem:[%s2547 + $0x128] sm:$0xff]
                  %2624 = vst [vmem:[%s2548 + $0x128] sm:$0xff] %v2623
                  %v2625 = vld [vmem:[%s2547 + $0x130] sm:$0xff]
                  %2626 = vst [vmem:[%s2548 + $0x130] sm:$0xff] %v2625
                  %v2627 = vld [vmem:[%s2547 + $0x138] sm:$0xff]
                  %2628 = vst [vmem:[%s2548 + $0x138] sm:$0xff] %v2627
                  %v2629 = vld [vmem:[%s2547 + $0x140] sm:$0xff]
                  %2630 = vst [vmem:[%s2548 + $0x140] sm:$0xff] %v2629
                  %v2631 = vld [vmem:[%s2547 + $0x148] sm:$0xff]
                  %2632 = vst [vmem:[%s2548 + $0x148] sm:$0xff] %v2631
                  %v2633 = vld [vmem:[%s2547 + $0x150] sm:$0xff]
                  %2634 = vst [vmem:[%s2548 + $0x150] sm:$0xff] %v2633
                  %v2635 = vld [vmem:[%s2547 + $0x158] sm:$0xff]
                  %2636 = vst [vmem:[%s2548 + $0x158] sm:$0xff] %v2635
                  %v2637 = vld [vmem:[%s2547 + $0x160] sm:$0xff]
                  %2638 = vst [vmem:[%s2548 + $0x160] sm:$0xff] %v2637
                  %v2639 = vld [vmem:[%s2547 + $0x168] sm:$0xff]
                  %2640 = vst [vmem:[%s2548 + $0x168] sm:$0xff] %v2639
                  %v2641 = vld [vmem:[%s2547 + $0x170] sm:$0xff]
                  %2642 = vst [vmem:[%s2548 + $0x170] sm:$0xff] %v2641
                  %v2643 = vld [vmem:[%s2547 + $0x178] sm:$0xff]
                  %2644 = vst [vmem:[%s2548 + $0x178] sm:$0xff] %v2643
                  %v2645 = vld [vmem:[%s2547 + $0x180] sm:$0xff]
                  %2646 = vst [vmem:[%s2548 + $0x180] sm:$0xff] %v2645
                  %v2647 = vld [vmem:[%s2547 + $0x188] sm:$0xff]
                  %2648 = vst [vmem:[%s2548 + $0x188] sm:$0xff] %v2647
                  %v2649 = vld [vmem:[%s2547 + $0x190] sm:$0xff]
                  %2650 = vst [vmem:[%s2548 + $0x190] sm:$0xff] %v2649
                  %v2651 = vld [vmem:[%s2547 + $0x198] sm:$0xff]
                  %2652 = vst [vmem:[%s2548 + $0x198] sm:$0xff] %v2651
                  %v2653 = vld [vmem:[%s2547 + $0x1a0] sm:$0xff]
                  %2654 = vst [vmem:[%s2548 + $0x1a0] sm:$0xff] %v2653
                  %v2655 = vld [vmem:[%s2547 + $0x1a8] sm:$0xff]
                  %2656 = vst [vmem:[%s2548 + $0x1a8] sm:$0xff] %v2655
                  %v2657 = vld [vmem:[%s2547 + $0x1b0] sm:$0xff]
                  %2658 = vst [vmem:[%s2548 + $0x1b0] sm:$0xff] %v2657
                  %v2659 = vld [vmem:[%s2547 + $0x1b8] sm:$0xff]
                  %2660 = vst [vmem:[%s2548 + $0x1b8] sm:$0xff] %v2659
                  %v2661 = vld [vmem:[%s2547 + $0x1c0] sm:$0xff]
                  %2662 = vst [vmem:[%s2548 + $0x1c0] sm:$0xff] %v2661
                  %v2663 = vld [vmem:[%s2547 + $0x1c8] sm:$0xff]
                  %2664 = vst [vmem:[%s2548 + $0x1c8] sm:$0xff] %v2663
                  %v2665 = vld [vmem:[%s2547 + $0x1d0] sm:$0xff]
                  %2666 = vst [vmem:[%s2548 + $0x1d0] sm:$0xff] %v2665
                  %v2667 = vld [vmem:[%s2547 + $0x1d8] sm:$0xff]
                  %2668 = vst [vmem:[%s2548 + $0x1d8] sm:$0xff] %v2667
                  %v2669 = vld [vmem:[%s2547 + $0x1e0] sm:$0xff]
                  %2670 = vst [vmem:[%s2548 + $0x1e0] sm:$0xff] %v2669
                  %v2671 = vld [vmem:[%s2547 + $0x1e8] sm:$0xff]
                  %2672 = vst [vmem:[%s2548 + $0x1e8] sm:$0xff] %v2671
                  %v2673 = vld [vmem:[%s2547 + $0x1f0] sm:$0xff]
                  %2674 = vst [vmem:[%s2548 + $0x1f0] sm:$0xff] %v2673
                  %s2675 = sadd.s32 1, %s2546
                  %p2676 = scmp.ge.s32.totalorder %s2675, %s2538
                  %s2677 = scalar_select %p2676, 0, %s2675
                  %s2678 = smul.u32 %s2677, 504
                  %s2679 = smul.u32 %s2677, 504
                  %s2680 = scalar_lea.vmem %s2347, %s2678 [#allocation2]
                  %s2681 = scalar_lea.vmem %s2358, %s2679
                $region87: #{tpu_custom_call.1} parent=81 // loop_footer
                  %s2543 = sadd.s32 %s2541, 1
                $region88: #{tpu_custom_call.1} parent=81 // loop_footer_branch
                  %2540 = sbr.rel target = $region84
                $region89: #{tpu_custom_call.1} parent=81 // loop_exit
                  _
                %s2682 = sdiv.u32.pop %s2354, 63
                %s2683 = srem.u32.pop %s2354, 63
                %s2684 = smul.u32 %s2682, 63
                %s2685 = smul.u32 8, %s2684
                %s2686 = scalar_lea.vmem %s2347, %s2685 [#allocation2]
                %s2687 = smul.u32 8, %s2684
                %s2688 = scalar_lea.vmem %s2358, %s2687
                // While loop
                $region90: #{tpu_custom_call.1} parent=81 // loop_pre_header
                  _
                $region91: #{tpu_custom_call.1} parent=81 // loop_header
                  %s2690 = sphi 0, %s2692
                  %p2691 = scmp.ge.s32.totalorder %s2690, %s2683
                  %s2695 = sphi 0, %s2702
                  %s2696 = sphi %s2686, %s2705
                  %s2697 = sphi %s2688, %s2706
                $region92: #{tpu_custom_call.1} parent=81 // loop_header_branch
                  %2694 = sbr.rel (%p2691) target = $region96
                $region93: #{tpu_custom_call.1} parent=81 // loop_body
                  %v2698 = vld [vmem:[%s2696] sm:$0xff]
                  %2699 = vst [vmem:[%s2697] sm:$0xff] %v2698
                  %s2700 = sadd.s32 1, %s2695
                  %p2701 = scmp.ge.s32.totalorder %s2700, %s2683
                  %s2702 = scalar_select %p2701, 0, %s2700
                  %s2703 = smul.u32 %s2702, 8
                  %s2704 = smul.u32 %s2702, 8
                  %s2705 = scalar_lea.vmem %s2686, %s2703 [#allocation2]
                  %s2706 = scalar_lea.vmem %s2688, %s2704
                $region94: #{tpu_custom_call.1} parent=81 // loop_footer
                  %s2692 = sadd.s32 %s2690, 1
                $region95: #{tpu_custom_call.1} parent=81 // loop_footer_branch
                  %2689 = sbr.rel target = $region91
                $region96: #{tpu_custom_call.1} parent=81 // loop_exit
                  _
              $region82: #{tpu_custom_call.1} parent=59 // pred_fallthru
                _
              // Predicated region
              $region97: #{tpu_custom_call.1} parent=59 // pred_check
                _
              $region98: #{tpu_custom_call.1} parent=59 // pred_check_branch
                %2708 = sbr.rel target = $region100
              $region99: #{tpu_custom_call.1} parent=59 // pred_region
                _
              $region100: #{tpu_custom_call.1} parent=59 // pred_fallthru
                _
            $region60: #{tpu_custom_call.1} parent=55 // pred_fallthru
              _
            // Predicated region
            $region61: #{tpu_custom_call.1} parent=55 // pred_check
              _
            $region62: #{tpu_custom_call.1} parent=55 // pred_check_branch
              %2365 = sbr.rel target = $region64
            $region63: #{tpu_custom_call.1} parent=55 // pred_region
              %s2367 = sdiv.u32.pop %s2354, 63
              %s2368 = srem.u32.pop %s2354, 63
              // While loop
              $region65: #{tpu_custom_call.1} parent=63 // loop_pre_header
                _
              $region66: #{tpu_custom_call.1} parent=63 // loop_header
                %s2370 = sphi 0, %s2372
                %p2371 = scmp.ge.s32.totalorder %s2370, %s2367
                %s2375 = sphi 0, %s2506
                %s2376 = sphi %s2347, %s2509
                %s2377 = sphi %s2358, %s2510
              $region67: #{tpu_custom_call.1} parent=63 // loop_header_branch
                %2374 = sbr.rel (%p2371) target = $region71
              $region68: #{tpu_custom_call.1} parent=63 // loop_body
                %v2378 = vld [vmem:[%s2376] sm:$0xff]
                %2379 = vst [vmem:[%s2377] sm:$0xff] %v2378
                %v2380 = vld [vmem:[%s2376 + $0x8] sm:$0xff]
                %2381 = vst [vmem:[%s2377 + $0x8] sm:$0xff] %v2380
                %v2382 = vld [vmem:[%s2376 + $0x10] sm:$0xff]
                %2383 = vst [vmem:[%s2377 + $0x10] sm:$0xff] %v2382
                %v2384 = vld [vmem:[%s2376 + $0x18] sm:$0xff]
                %2385 = vst [vmem:[%s2377 + $0x18] sm:$0xff] %v2384
                %v2386 = vld [vmem:[%s2376 + $0x20] sm:$0xff]
                %2387 = vst [vmem:[%s2377 + $0x20] sm:$0xff] %v2386
                %v2388 = vld [vmem:[%s2376 + $0x28] sm:$0xff]
                %2389 = vst [vmem:[%s2377 + $0x28] sm:$0xff] %v2388
                %v2390 = vld [vmem:[%s2376 + $0x30] sm:$0xff]
                %2391 = vst [vmem:[%s2377 + $0x30] sm:$0xff] %v2390
                %v2392 = vld [vmem:[%s2376 + $0x38] sm:$0xff]
                %2393 = vst [vmem:[%s2377 + $0x38] sm:$0xff] %v2392
                %v2394 = vld [vmem:[%s2376 + $0x40] sm:$0xff]
                %2395 = vst [vmem:[%s2377 + $0x40] sm:$0xff] %v2394
                %v2396 = vld [vmem:[%s2376 + $0x48] sm:$0xff]
                %2397 = vst [vmem:[%s2377 + $0x48] sm:$0xff] %v2396
                %v2398 = vld [vmem:[%s2376 + $0x50] sm:$0xff]
                %2399 = vst [vmem:[%s2377 + $0x50] sm:$0xff] %v2398
                %v2400 = vld [vmem:[%s2376 + $0x58] sm:$0xff]
                %2401 = vst [vmem:[%s2377 + $0x58] sm:$0xff] %v2400
                %v2402 = vld [vmem:[%s2376 + $0x60] sm:$0xff]
                %2403 = vst [vmem:[%s2377 + $0x60] sm:$0xff] %v2402
                %v2404 = vld [vmem:[%s2376 + $0x68] sm:$0xff]
                %2405 = vst [vmem:[%s2377 + $0x68] sm:$0xff] %v2404
                %v2406 = vld [vmem:[%s2376 + $0x70] sm:$0xff]
                %2407 = vst [vmem:[%s2377 + $0x70] sm:$0xff] %v2406
                %v2408 = vld [vmem:[%s2376 + $0x78] sm:$0xff]
                %2409 = vst [vmem:[%s2377 + $0x78] sm:$0xff] %v2408
                %v2410 = vld [vmem:[%s2376 + $0x80] sm:$0xff]
                %2411 = vst [vmem:[%s2377 + $0x80] sm:$0xff] %v2410
                %v2412 = vld [vmem:[%s2376 + $0x88] sm:$0xff]
                %2413 = vst [vmem:[%s2377 + $0x88] sm:$0xff] %v2412
                %v2414 = vld [vmem:[%s2376 + $0x90] sm:$0xff]
                %2415 = vst [vmem:[%s2377 + $0x90] sm:$0xff] %v2414
                %v2416 = vld [vmem:[%s2376 + $0x98] sm:$0xff]
                %2417 = vst [vmem:[%s2377 + $0x98] sm:$0xff] %v2416
                %v2418 = vld [vmem:[%s2376 + $0xa0] sm:$0xff]
                %2419 = vst [vmem:[%s2377 + $0xa0] sm:$0xff] %v2418
                %v2420 = vld [vmem:[%s2376 + $0xa8] sm:$0xff]
                %2421 = vst [vmem:[%s2377 + $0xa8] sm:$0xff] %v2420
                %v2422 = vld [vmem:[%s2376 + $0xb0] sm:$0xff]
                %2423 = vst [vmem:[%s2377 + $0xb0] sm:$0xff] %v2422
                %v2424 = vld [vmem:[%s2376 + $0xb8] sm:$0xff]
                %2425 = vst [vmem:[%s2377 + $0xb8] sm:$0xff] %v2424
                %v2426 = vld [vmem:[%s2376 + $0xc0] sm:$0xff]
                %2427 = vst [vmem:[%s2377 + $0xc0] sm:$0xff] %v2426
                %v2428 = vld [vmem:[%s2376 + $0xc8] sm:$0xff]
                %2429 = vst [vmem:[%s2377 + $0xc8] sm:$0xff] %v2428
                %v2430 = vld [vmem:[%s2376 + $0xd0] sm:$0xff]
                %2431 = vst [vmem:[%s2377 + $0xd0] sm:$0xff] %v2430
                %v2432 = vld [vmem:[%s2376 + $0xd8] sm:$0xff]
                %2433 = vst [vmem:[%s2377 + $0xd8] sm:$0xff] %v2432
                %v2434 = vld [vmem:[%s2376 + $0xe0] sm:$0xff]
                %2435 = vst [vmem:[%s2377 + $0xe0] sm:$0xff] %v2434
                %v2436 = vld [vmem:[%s2376 + $0xe8] sm:$0xff]
                %2437 = vst [vmem:[%s2377 + $0xe8] sm:$0xff] %v2436
                %v2438 = vld [vmem:[%s2376 + $0xf0] sm:$0xff]
                %2439 = vst [vmem:[%s2377 + $0xf0] sm:$0xff] %v2438
                %v2440 = vld [vmem:[%s2376 + $0xf8] sm:$0xff]
                %2441 = vst [vmem:[%s2377 + $0xf8] sm:$0xff] %v2440
                %v2442 = vld [vmem:[%s2376 + $0x100] sm:$0xff]
                %2443 = vst [vmem:[%s2377 + $0x100] sm:$0xff] %v2442
                %v2444 = vld [vmem:[%s2376 + $0x108] sm:$0xff]
                %2445 = vst [vmem:[%s2377 + $0x108] sm:$0xff] %v2444
                %v2446 = vld [vmem:[%s2376 + $0x110] sm:$0xff]
                %2447 = vst [vmem:[%s2377 + $0x110] sm:$0xff] %v2446
                %v2448 = vld [vmem:[%s2376 + $0x118] sm:$0xff]
                %2449 = vst [vmem:[%s2377 + $0x118] sm:$0xff] %v2448
                %v2450 = vld [vmem:[%s2376 + $0x120] sm:$0xff]
                %2451 = vst [vmem:[%s2377 + $0x120] sm:$0xff] %v2450
                %v2452 = vld [vmem:[%s2376 + $0x128] sm:$0xff]
                %2453 = vst [vmem:[%s2377 + $0x128] sm:$0xff] %v2452
                %v2454 = vld [vmem:[%s2376 + $0x130] sm:$0xff]
                %2455 = vst [vmem:[%s2377 + $0x130] sm:$0xff] %v2454
                %v2456 = vld [vmem:[%s2376 + $0x138] sm:$0xff]
                %2457 = vst [vmem:[%s2377 + $0x138] sm:$0xff] %v2456
                %v2458 = vld [vmem:[%s2376 + $0x140] sm:$0xff]
                %2459 = vst [vmem:[%s2377 + $0x140] sm:$0xff] %v2458
                %v2460 = vld [vmem:[%s2376 + $0x148] sm:$0xff]
                %2461 = vst [vmem:[%s2377 + $0x148] sm:$0xff] %v2460
                %v2462 = vld [vmem:[%s2376 + $0x150] sm:$0xff]
                %2463 = vst [vmem:[%s2377 + $0x150] sm:$0xff] %v2462
                %v2464 = vld [vmem:[%s2376 + $0x158] sm:$0xff]
                %2465 = vst [vmem:[%s2377 + $0x158] sm:$0xff] %v2464
                %v2466 = vld [vmem:[%s2376 + $0x160] sm:$0xff]
                %2467 = vst [vmem:[%s2377 + $0x160] sm:$0xff] %v2466
                %v2468 = vld [vmem:[%s2376 + $0x168] sm:$0xff]
                %2469 = vst [vmem:[%s2377 + $0x168] sm:$0xff] %v2468
                %v2470 = vld [vmem:[%s2376 + $0x170] sm:$0xff]
                %2471 = vst [vmem:[%s2377 + $0x170] sm:$0xff] %v2470
                %v2472 = vld [vmem:[%s2376 + $0x178] sm:$0xff]
                %2473 = vst [vmem:[%s2377 + $0x178] sm:$0xff] %v2472
                %v2474 = vld [vmem:[%s2376 + $0x180] sm:$0xff]
                %2475 = vst [vmem:[%s2377 + $0x180] sm:$0xff] %v2474
                %v2476 = vld [vmem:[%s2376 + $0x188] sm:$0xff]
                %2477 = vst [vmem:[%s2377 + $0x188] sm:$0xff] %v2476
                %v2478 = vld [vmem:[%s2376 + $0x190] sm:$0xff]
                %2479 = vst [vmem:[%s2377 + $0x190] sm:$0xff] %v2478
                %v2480 = vld [vmem:[%s2376 + $0x198] sm:$0xff]
                %2481 = vst [vmem:[%s2377 + $0x198] sm:$0xff] %v2480
                %v2482 = vld [vmem:[%s2376 + $0x1a0] sm:$0xff]
                %2483 = vst [vmem:[%s2377 + $0x1a0] sm:$0xff] %v2482
                %v2484 = vld [vmem:[%s2376 + $0x1a8] sm:$0xff]
                %2485 = vst [vmem:[%s2377 + $0x1a8] sm:$0xff] %v2484
                %v2486 = vld [vmem:[%s2376 + $0x1b0] sm:$0xff]
                %2487 = vst [vmem:[%s2377 + $0x1b0] sm:$0xff] %v2486
                %v2488 = vld [vmem:[%s2376 + $0x1b8] sm:$0xff]
                %2489 = vst [vmem:[%s2377 + $0x1b8] sm:$0xff] %v2488
                %v2490 = vld [vmem:[%s2376 + $0x1c0] sm:$0xff]
                %2491 = vst [vmem:[%s2377 + $0x1c0] sm:$0xff] %v2490
                %v2492 = vld [vmem:[%s2376 + $0x1c8] sm:$0xff]
                %2493 = vst [vmem:[%s2377 + $0x1c8] sm:$0xff] %v2492
                %v2494 = vld [vmem:[%s2376 + $0x1d0] sm:$0xff]
                %2495 = vst [vmem:[%s2377 + $0x1d0] sm:$0xff] %v2494
                %v2496 = vld [vmem:[%s2376 + $0x1d8] sm:$0xff]
                %2497 = vst [vmem:[%s2377 + $0x1d8] sm:$0xff] %v2496
                %v2498 = vld [vmem:[%s2376 + $0x1e0] sm:$0xff]
                %2499 = vst [vmem:[%s2377 + $0x1e0] sm:$0xff] %v2498
                %v2500 = vld [vmem:[%s2376 + $0x1e8] sm:$0xff]
                %2501 = vst [vmem:[%s2377 + $0x1e8] sm:$0xff] %v2500
                %v2502 = vld [vmem:[%s2376 + $0x1f0] sm:$0xff]
                %2503 = vst [vmem:[%s2377 + $0x1f0] sm:$0xff] %v2502
                %s2504 = sadd.s32 1, %s2375
                %p2505 = scmp.ge.s32.totalorder %s2504, %s2367
                %s2506 = scalar_select %p2505, 0, %s2504
                %s2507 = smul.u32 %s2506, 504
                %s2508 = smul.u32 %s2506, 504
                %s2509 = scalar_lea.vmem %s2347, %s2507 [#allocation2]
                %s2510 = scalar_lea.vmem %s2358, %s2508
              $region69: #{tpu_custom_call.1} parent=63 // loop_footer
                %s2372 = sadd.s32 %s2370, 1
              $region70: #{tpu_custom_call.1} parent=63 // loop_footer_branch
                %2369 = sbr.rel target = $region66
              $region71: #{tpu_custom_call.1} parent=63 // loop_exit
                _
              %s2511 = sdiv.u32.pop %s2354, 63
              %s2512 = srem.u32.pop %s2354, 63
              %s2513 = smul.u32 %s2511, 63
              %s2514 = smul.u32 8, %s2513
              %s2515 = scalar_lea.vmem %s2347, %s2514 [#allocation2]
              %s2516 = smul.u32 8, %s2513
              %s2517 = scalar_lea.vmem %s2358, %s2516
              // While loop
              $region72: #{tpu_custom_call.1} parent=63 // loop_pre_header
                _
              $region73: #{tpu_custom_call.1} parent=63 // loop_header
                %s2519 = sphi 0, %s2521
                %p2520 = scmp.ge.s32.totalorder %s2519, %s2512
                %s2524 = sphi 0, %s2531
                %s2525 = sphi %s2515, %s2534
                %s2526 = sphi %s2517, %s2535
              $region74: #{tpu_custom_call.1} parent=63 // loop_header_branch
                %2523 = sbr.rel (%p2520) target = $region78
              $region75: #{tpu_custom_call.1} parent=63 // loop_body
                %v2527 = vld [vmem:[%s2525] sm:$0xff]
                %2528 = vst [vmem:[%s2526] sm:$0xff] %v2527
                %s2529 = sadd.s32 1, %s2524
                %p2530 = scmp.ge.s32.totalorder %s2529, %s2512
                %s2531 = scalar_select %p2530, 0, %s2529
                %s2532 = smul.u32 %s2531, 8
                %s2533 = smul.u32 %s2531, 8
                %s2534 = scalar_lea.vmem %s2515, %s2532 [#allocation2]
                %s2535 = scalar_lea.vmem %s2517, %s2533
              $region76: #{tpu_custom_call.1} parent=63 // loop_footer
                %s2521 = sadd.s32 %s2519, 1
              $region77: #{tpu_custom_call.1} parent=63 // loop_footer_branch
                %2518 = sbr.rel target = $region73
              $region78: #{tpu_custom_call.1} parent=63 // loop_exit
                _
            $region64: #{tpu_custom_call.1} parent=55 // pred_fallthru
              _
          $region56: #{tpu_custom_call.1} parent=51 // pred_fallthru
            _
          %2709 = vnop
        $region52: #{tpu_custom_call.1} parent=47 // pred_fallthru
          _
      $region48: #{tpu_custom_call.1} parent=5 // pred_fallthru
        _
      %p2710 = scmp.le.s32.totalorder 2, %s13
      // Predicated region
      $region101: #{tpu_custom_call.1} parent=5 // pred_check
        %p2711 = pneg %p2710
      $region102: #{tpu_custom_call.1} parent=5 // pred_check_branch
        %2713 = sbr.rel (%p2711) target = $region104
      $region103: #{tpu_custom_call.1} parent=5 // pred_region
        %s2714 = ssub.s32 %s13, 2
        // Predicated region
        $region105: #{tpu_custom_call.1} parent=103 // pred_check
          %p2715 = pneg %p194
        $region106: #{tpu_custom_call.1} parent=103 // pred_check_branch
          %2717 = sbr.rel (%p2715) target = $region108
        $region107: #{tpu_custom_call.1} parent=103 // pred_region
          %s2718 = sand.u32 %s179, 1
          %s2719 = sand.u32 %s179, 1
          %s2720 = smul.addr %s2719, 504
          %s2721 = scalar_lea.vmem [#allocation2], %s2720
        $region108: #{tpu_custom_call.1} parent=103 // pred_fallthru
          _
      $region104: #{tpu_custom_call.1} parent=5 // pred_fallthru
        _
    $region6: #{tpu_custom_call.1} parent=1 // loop_footer
      %s17 = sadd.s32 1, %s13
    $region7: #{tpu_custom_call.1} parent=1 // loop_footer_branch
      %12 = sbr.rel target = $region3
    $region8: #{tpu_custom_call.1} parent=1 // loop_exit
      _

</llo_original>
